<compile_context>
chip_gen: v6e
topology: v6e:2x2x1
jax: 0.10.0
libtpu: 0.0.40
codegen_flags: <defaults>
</compile_context>

<pallas_src>
import functools

import jax
import jax.numpy as jnp
from jax.experimental import pallas as pl
from jax.experimental.pallas import tpu as pltpu


def _round_up(x, m):
    return (x + m - 1) // m * m


def _pick_tile(n_pad, cap):
    """Largest multiple of 128 that divides n_pad and is <= cap (no over-pad)."""
    best = 128
    t = 128
    while t <= min(cap, n_pad):
        if n_pad % t == 0:
            best = t
        t += 128
    return best


# ----------------------------------------------------------------------------
# Kernel 0: XW1s = (dinv*X) @ W1   (bf16 operands, f32 accumulation)
# ----------------------------------------------------------------------------
def _xw1_kernel(x_ref, w1_ref, o_ref):
    o_ref[...] = jnp.dot(x_ref[...], w1_ref[...],
                         preferred_element_type=jnp.float32).astype(o_ref.dtype)


# ----------------------------------------------------------------------------
# Kernel 1 (fused): over grid (i row-tile, k col-tile) of the raw adjacency A:
#   acc[i]        += A[i,k] @ XW1s[k]          (XW1s VMEM-resident)
#   PA_raw[:, k]  += pool_scaled[:, i] @ A[i,k] (accumulated into resident out)
#   epilogue k==last:  Hs[i] = dinv_i * ReLU(dinv_i * acc + b1)
# A is read from HBM exactly once; H is only ever written as Hs (bf16).
# ----------------------------------------------------------------------------
def _conv1_fused_kernel(a_ref, xw1_ref, pool_ref, dinv_ref, b1_ref,
                        hs_ref, pa_ref, acc_ref, *, tile):
    i = pl.program_id(0)
    k = pl.program_id(1)

    @pl.when((i == 0) & (k == 0))
    def _():
        pa_ref[...] = jnp.zeros_like(pa_ref)

    @pl.when(k == 0)
    def _():
        acc_ref[...] = jnp.zeros_like(acc_ref)

    a_tile = a_ref[...]                                   # (tile, tile) bf16
    start = pl.multiple_of(k * tile, tile)

    # conv1 aggregation (contraction dim = k columns of A).
    xw1_blk = xw1_ref[pl.ds(start, tile), :]              # (tile, 128) bf16
    acc_ref[...] += jnp.dot(a_tile, xw1_blk,
                            preferred_element_type=jnp.float32)

    # Fused PA accumulation: pa[:, k-cols] += pool_scaled[:, i-rows] @ A[i,k].
    pa_ref[:, pl.ds(start, tile)] += jnp.dot(
        pool_ref[...], a_tile, preferred_element_type=jnp.float32)

    @pl.when(k == pl.num_programs(1) - 1)
    def _():
        d = dinv_ref[...]                                  # (tile, 1) f32
        h = jnp.maximum(acc_ref[...] * d + b1_ref[...], 0.0)
        hs_ref[...] = (h * d).astype(hs_ref.dtype)         # Hs = dinv * H


# ----------------------------------------------------------------------------
# Kernel 2: pooled = PA_raw @ Hs (reduction over node tiles), then
#           emb = pooled @ W2 + b2 ; heads = emb @ W_heads + b_heads
# PA_raw stays fully VMEM-resident; epilogue matmuls use bf16 operands.
# ----------------------------------------------------------------------------
def _pool_heads_kernel(pa_ref, hs_ref, w2_ref, b2_ref, wh_ref, bh_ref,
                       emb_ref, heads_ref, pooled_ref, *, tile):
    k = pl.program_id(0)

    @pl.when(k == 0)
    def _():
        pooled_ref[...] = jnp.zeros_like(pooled_ref)

    start = pl.multiple_of(k * tile, tile)
    pa_blk = pa_ref[:, pl.ds(start, tile)].astype(jnp.bfloat16)
    pooled_ref[...] += jnp.dot(pa_blk, hs_ref[...],
                               preferred_element_type=jnp.float32)

    @pl.when(k == pl.num_programs(0) - 1)
    def _():
        pooled_bf = pooled_ref[...].astype(jnp.bfloat16)
        emb = jnp.dot(pooled_bf, w2_ref[...],
                      preferred_element_type=jnp.float32) + b2_ref[...]
        emb_ref[...] = emb
        heads_ref[...] = jnp.dot(emb.astype(jnp.bfloat16), wh_ref[...],
                                 preferred_element_type=jnp.float32) + bh_ref[...]


# ----------------------------------------------------------------------------
# Wrapper
# ----------------------------------------------------------------------------
def hierarchical_malware_gnn_forward(x, edge_index, batch, params,
                                     family_keys, num_graphs,
                                     *, tile_n=512,
                                     vmem_limit_bytes=48 * 1024 * 1024):
    f32, bf16 = jnp.float32, jnp.bfloat16
    n, f = x.shape

    n_pad = _round_up(n, 128)
    tile = _pick_tile(n_pad, tile_n)
    f_pad = _round_up(f, 128)
    b_pad = _round_up(max(num_graphs, 1), 8)
    grid_i = n_pad // tile

    # ---- raw adjacency (A + I), scattered ONCE into padded bf16 -------------
    # (small integer counts -> exact in bf16; duplicate edges sum, PyG style)
    a_bf = jnp.zeros((n_pad, n_pad), bf16)
    a_bf = a_bf.at[edge_index[0], edge_index[1]].add(jnp.ones((), bf16))
    diag = jnp.arange(n)
    a_bf = a_bf.at[diag, diag].add(jnp.ones((), bf16))

    deg = jnp.sum(a_bf, axis=1, dtype=f32)                       # (n_pad,)
    dinv = jnp.where(deg > 0, 1.0 / jnp.sqrt(jnp.maximum(deg, 1e-12)), 0.0)
    dinv_col = dinv.reshape(n_pad, 1)                            # f32

    # ---- dinv folded into X (rows): XW1s = dinv * (X @ W1) ------------------
    xs = jnp.zeros((n_pad, f_pad), bf16).at[:n, :f].set(
        (x * dinv[:n, None]).astype(bf16))
    w1 = jnp.zeros((f_pad, 128), bf16).at[:f, :].set(params["conv1_w"].astype(bf16))
    b1 = params["conv1_b"].reshape(1, -1).astype(f32)            # (1, 128)

    # ---- mean-pool matrix with dinv folded into its columns -----------------
    one_hot = (batch[None, :] == jnp.arange(num_graphs)[:, None]).astype(f32)
    counts = jnp.maximum(one_hot.sum(axis=1, keepdims=True), 1.0)
    pool_scaled = (one_hot / counts) * dinv[None, :n]            # (B, n)
    pool_bf = jnp.zeros((b_pad, n_pad), bf16).at[:num_graphs, :n].set(
        pool_scaled.astype(bf16))

    # ---- conv2 / packed classifier heads (lane-dense) ------------------------
    w2 = params["conv2_w"].astype(bf16)                          # (128, E)
    b2 = params["conv2_b"].reshape(1, -1).astype(f32)            # (1, E)
    emb_dim = w2.shape[1]

    head_ws = [params["group_w"].T] + [params["fam_w"][k].T for k in family_keys]
    head_bs = [params["group_b"]] + [params["fam_b"][k] for k in family_keys]
    widths = [w.shape[1] for w in head_ws]
    total_w = sum(widths)
    hp = _round_up(total_w, 128)
    wh = jnp.zeros((emb_dim, hp), bf16).at[:, :total_w].set(
        jnp.concatenate(head_ws, axis=1).astype(bf16))
    bh = jnp.zeros((1, hp), f32).at[:, :total_w].set(
        jnp.concatenate(head_bs).reshape(1, -1).astype(f32))

    # ---- kernel 0: XW1s ------------------------------------------------------
    xw1s = pl.pallas_call(
        _xw1_kernel,
        out_shape=jax.ShapeDtypeStruct((n_pad, 128), bf16),
        grid=(grid_i,),
        in_specs=[pl.BlockSpec((tile, f_pad), lambda i: (i, 0)),
                  pl.BlockSpec((f_pad, 128), lambda i: (0, 0))],
        out_specs=pl.BlockSpec((tile, 128), lambda i: (i, 0)),
        compiler_params=pltpu.CompilerParams(
            dimension_semantics=("parallel",),
            vmem_limit_bytes=vmem_limit_bytes),
    )(xs, w1)

    # ---- kernel 1: fused conv1 + PA accumulation (single pass over A) -------
    # Both grid axes "arbitrary": PA accumulates across the row axis, so the
    # grid must run sequentially (see v7x TODO at top of file).
    hs, pa = pl.pallas_call(
        functools.partial(_conv1_fused_kernel, tile=tile),
        out_shape=(jax.ShapeDtypeStruct((n_pad, 128), bf16),
                   jax.ShapeDtypeStruct((b_pad, n_pad), f32)),
        grid=(grid_i, grid_i),
        in_specs=[pl.BlockSpec((tile, tile), lambda i, k: (i, k)),
                  pl.BlockSpec((n_pad, 128), lambda i, k: (0, 0)),   # resident XW1s
                  pl.BlockSpec((b_pad, tile), lambda i, k: (0, i)),
                  pl.BlockSpec((tile, 1), lambda i, k: (i, 0)),
                  pl.BlockSpec((1, 128), lambda i, k: (0, 0))],
        out_specs=(pl.BlockSpec((tile, 128), lambda i, k: (i, 0)),
                   pl.BlockSpec((b_pad, n_pad), lambda i, k: (0, 0))),
        scratch_shapes=[pltpu.VMEM((tile, 128), jnp.float32)],
        compiler_params=pltpu.CompilerParams(
            dimension_semantics=("arbitrary", "arbitrary"),
            vmem_limit_bytes=vmem_limit_bytes),
    )(a_bf, xw1s, pool_bf, dinv_col, b1)

    # ---- kernel 2: pooled reduction + conv2 projection + fused heads --------
    emb_p, heads_p = pl.pallas_call(
        functools.partial(_pool_heads_kernel, tile=tile),
        out_shape=(jax.ShapeDtypeStruct((b_pad, emb_dim), f32),
                   jax.ShapeDtypeStruct((b_pad, hp), f32)),
        grid=(grid_i,),
        in_specs=[pl.BlockSpec((b_pad, n_pad), lambda k: (0, 0)),    # resident PA
                  pl.BlockSpec((tile, 128), lambda k: (k, 0)),
                  pl.BlockSpec((128, emb_dim), lambda k: (0, 0)),
                  pl.BlockSpec((1, emb_dim), lambda k: (0, 0)),
                  pl.BlockSpec((emb_dim, hp), lambda k: (0, 0)),
                  pl.BlockSpec((1, hp), lambda k: (0, 0))],
        out_specs=(pl.BlockSpec((b_pad, emb_dim), lambda k: (0, 0)),
                   pl.BlockSpec((b_pad, hp), lambda k: (0, 0))),
        scratch_shapes=[pltpu.VMEM((b_pad, 128), jnp.float32)],
        compiler_params=pltpu.CompilerParams(
            dimension_semantics=("arbitrary",),
            vmem_limit_bytes=vmem_limit_bytes),
    )(pa, hs, w2, b2, wh, bh)

    emb = emb_p[:num_graphs]
    heads = heads_p[:num_graphs]

    # ---- unpack fused heads ---------------------------------------------------
    group_logits = heads[:, :widths[0]]
    family_logits = {}
    off = widths[0]
    for key, w in zip(family_keys, widths[1:]):
        family_logits[key] = heads[:, off:off + w]
        off += w
    return emb, group_logits, family_logits


# ----------------------------------------------------------------------------
# Pure-JAX f32 reference (matches the PyTorch eval-mode forward)
# ----------------------------------------------------------------------------
def reference_forward(x, edge_index, batch, params, family_keys, num_graphs):
    f32 = jnp.float32
    n = x.shape[0]
    adj = jnp.zeros((n, n), f32).at[edge_index[0], edge_index[1]].add(1.0)
    adj = adj + jnp.eye(n, dtype=f32)
    deg = jnp.sum(adj, axis=1)
    dis = jnp.where(deg > 0, 1.0 / jnp.sqrt(deg), 0.0)
    a = adj * dis[:, None] * dis[None, :]
    h = jnp.maximum(a @ (x @ params["conv1_w"]) + params["conv1_b"], 0.0)
    z = a @ (h @ params["conv2_w"]) + params["conv2_b"]
    one_hot = (batch[None, :] == jnp.arange(num_graphs)[:, None]).astype(f32)
    pool = one_hot / jnp.maximum(one_hot.sum(1, keepdims=True), 1.0)
    emb = pool @ z
    grp = emb @ params["group_w"].T + params["group_b"]
    fams = {k: emb @ params["fam_w"][k].T + params["fam_b"][k]
            for k in family_keys}
    return emb, grp, fams


# ----------------------------------------------------------------------------
# Deterministic parameter construction (torch Linear conventions)
# ----------------------------------------------------------------------------
def init_params(key, num_features, num_groups, embedding_dim, family_sizes):
    keys = jax.random.split(key, 4)

    def glorot(k, shape):
        scale = jnp.sqrt(6.0 / (shape[0] + shape[1]))
        return jax.random.uniform(k, shape, jnp.float32, -scale, scale)

    params = {
        "conv1_w": glorot(keys[0], (num_features, 128)),
        "conv1_b": jnp.zeros((128,), jnp.float32),
        "conv2_w": glorot(keys[1], (128, embedding_dim)),
        "conv2_b": jnp.zeros((embedding_dim,), jnp.float32),
        "group_w": glorot(keys[2], (num_groups, embedding_dim)),  # (out, in)
        "group_b": jnp.zeros((num_groups,), jnp.float32),
        "fam_w": {},
        "fam_b": {},
    }
    fam_keys = jax.random.split(keys[3], len(family_sizes))
    for fk, (gid, nfam) in zip(fam_keys, family_sizes.items()):
        params["fam_w"][gid] = glorot(fk, (nfam, embedding_dim))
        params["fam_b"][gid] = jnp.zeros((nfam,), jnp.float32)
    return params


if __name__ == "__main__":
    key = jax.random.PRNGKey(0)
    k_x, k_p = jax.random.split(key, 2)

    # Small deterministic batch: 2 graphs x 100 nodes, 32 features.
    nodes_per_graph = 100
    num_graphs = 2
    num_nodes = nodes_per_graph * num_graphs
    num_features = 32
    num_groups = 16
    embedding_dim = 256

    x = jax.random.normal(k_x, (num_nodes, num_features), jnp.float32)

    # Per-graph chain edges + skip-7 edges, symmetrized.
    srcs, dsts = [], []
    for g in range(num_graphs):
        base = g * nodes_per_graph
        srcs.append(jnp.arange(base, base + nodes_per_graph - 1))
        dsts.append(jnp.arange(base + 1, base + nodes_per_graph))
        srcs.append(jnp.arange(base, base + nodes_per_graph - 7))
        dsts.append(jnp.arange(base + 7, base + nodes_per_graph))
    src = jnp.concatenate(srcs).astype(jnp.int32)
    dst = jnp.concatenate(dsts).astype(jnp.int32)
    edge_index = jnp.stack([jnp.concatenate([src, dst]),
                            jnp.concatenate([dst, src])], axis=0)
    batch = jnp.repeat(jnp.arange(num_graphs, dtype=jnp.int32), nodes_per_graph)

    # Two dynamically-added family classifiers, like add_family_classifier().
    family_sizes = {"0": 5, "3": 7}
    family_keys = tuple(family_sizes.keys())
    params = init_params(k_p, num_features, num_groups, embedding_dim,
                         family_sizes)

    # tile_n=128 here only so the 2x2 grid, resident-XW1 slicing and fused PA
    # accumulation are exercised at this tiny size; production uses the 512
    # default (tile is auto-shrunk to divide the 128-aligned node count).
    fwd = jax.jit(functools.partial(
        hierarchical_malware_gnn_forward,
        family_keys=family_keys, num_graphs=num_graphs, tile_n=128))

    emb, group_logits, family_logits = fwd(x, edge_index, batch, params)
    jax.block_until_ready((emb, group_logits, family_logits))

    # Shape / finiteness checks.
    assert emb.shape == (num_graphs, embedding_dim)
    assert group_logits.shape == (num_graphs, num_groups)
    assert family_logits["0"].shape == (num_graphs, 5)
    assert family_logits["3"].shape == (num_graphs, 7)
    assert bool(jnp.all(jnp.isfinite(emb)))
    assert bool(jnp.all(jnp.isfinite(group_logits)))

    # Numerical check against pure-f32 reference (bf16 MXU operands -> loose tol).
    emb_r, grp_r, fam_r = reference_forward(x, edge_index, batch, params,
                                            family_keys, num_graphs)
    assert bool(jnp.allclose(emb, emb_r, rtol=5e-2, atol=5e-2))
    assert bool(jnp.allclose(group_logits, grp_r, rtol=5e-2, atol=5e-2))
    for k in family_keys:
        assert bool(jnp.allclose(family_logits[k], fam_r[k], rtol=5e-2, atol=5e-2))

    # Also check the default (large-tile) configuration compiles & matches.
    fwd_big = jax.jit(functools.partial(
        hierarchical_malware_gnn_forward,
        family_keys=family_keys, num_graphs=num_graphs))
    emb2, grp2, fam2 = fwd_big(x, edge_index, batch, params)
    jax.block_until_ready((emb2, grp2, fam2))
    assert bool(jnp.allclose(emb2, emb_r, rtol=5e-2, atol=5e-2))

    print("KERNEL_OK")
</pallas_src>

<mosaic_0001>
module attributes {stable_mosaic.version = 11 : i64} {
  func.func @_xw1_kernel(%arg0: i32, %arg1: memref<128x128xbf16, #tpu.memory_space<vmem>>, %arg2: memref<128x128xbf16, #tpu.memory_space<vmem>>, %arg3: memref<128x128xbf16, #tpu.memory_space<vmem>>) attributes {dimension_semantics = [#tpu.dimension_semantics<parallel>], iteration_bounds = array<i64: 2>, scalar_prefetch = 0 : i64, scratch_operands = 0 : i64, tpu.core_type = #tpu.core_type<tc>, window_params = [{transform_indices = @transform_0, window_bounds = array<i64: 128, 128>}, {pipeline_mode = #tpu.pipeline_mode<synchronous>, transform_indices = @transform_1, window_bounds = array<i64: 128, 128>}, {transform_indices = @transform_2, window_bounds = array<i64: 128, 128>}]} {
    %c0 = arith.constant 0 : index
    %c0_0 = arith.constant 0 : index
    %0 = vector.load %arg1[%c0, %c0_0] : memref<128x128xbf16, #tpu.memory_space<vmem>>, vector<128x128xbf16>
    %c0_1 = arith.constant 0 : index
    %c0_2 = arith.constant 0 : index
    %1 = vector.load %arg2[%c0_1, %c0_2] : memref<128x128xbf16, #tpu.memory_space<vmem>>, vector<128x128xbf16>
    %cst = arith.constant dense<0.000000e+00> : vector<128x128xf32>
    %2 = tpu.matmul %0, %1, %cst {dimension_numbers = #tpu.dot_dimension_numbers<[1], [0], [0], [1], [0, 0, 1, 1], [], []>} : vector<128x128xbf16>, vector<128x128xbf16>, vector<128x128xf32> -> vector<128x128xf32>
    %3 = arith.truncf %2 : vector<128x128xf32> to vector<128x128xbf16>
    %c0_3 = arith.constant 0 : index
    %c0_4 = arith.constant 0 : index
    %4 = vector.load %arg3[%c0_3, %c0_4] : memref<128x128xbf16, #tpu.memory_space<vmem>>, vector<128x128xbf16>
    tpu.vector_store %arg3[%c0_3, %c0_4], %3 {strides = array<i32>} : memref<128x128xbf16, #tpu.memory_space<vmem>>, vector<128x128xbf16>,
    return
  }
  func.func @transform_0(%arg0: i32) -> (i32, i32) {
    %c0_i32 = arith.constant 0 : i32
    %c0_i32_0 = arith.constant 0 : i32
    return %arg0, %c0_i32 : i32, i32
  }
  func.func @transform_1(%arg0: i32) -> (i32, i32) {
    %c0_i32 = arith.constant 0 : i32
    %c0_i32_0 = arith.constant 0 : i32
    %c0_i32_1 = arith.constant 0 : i32
    return %c0_i32, %c0_i32_0 : i32, i32
  }
  func.func @transform_2(%arg0: i32) -> (i32, i32) {
    %c0_i32 = arith.constant 0 : i32
    %c0_i32_0 = arith.constant 0 : i32
    return %arg0, %c0_i32 : i32, i32
  }
}

module attributes {stable_mosaic.version = 11 : i64} {
  func.func @_conv1_fused_kernel(%arg0: i32, %arg1: i32, %arg2: memref<128x128xbf16, #tpu.memory_space<vmem>>, %arg3: memref<256x128xbf16, #tpu.memory_space<vmem>>, %arg4: memref<8x128xbf16, #tpu.memory_space<vmem>>, %arg5: memref<128x1xf32, #tpu.memory_space<vmem>>, %arg6: memref<1x128xf32, #tpu.memory_space<vmem>>, %arg7: memref<128x128xbf16, #tpu.memory_space<vmem>>, %arg8: memref<8x256xf32, #tpu.memory_space<vmem>>, %arg9: memref<128x128xf32, #tpu.memory_space<vmem>>) attributes {dimension_semantics = [#tpu.dimension_semantics<arbitrary>, #tpu.dimension_semantics<arbitrary>], iteration_bounds = array<i64: 2, 2>, scalar_prefetch = 0 : i64, scratch_operands = 1 : i64, tpu.core_type = #tpu.core_type<tc>, window_params = [{transform_indices = @transform_0, window_bounds = array<i64: 128, 128>}, {pipeline_mode = #tpu.pipeline_mode<synchronous>, transform_indices = @transform_1, window_bounds = array<i64: 256, 128>}, {transform_indices = @transform_2, window_bounds = array<i64: 8, 128>}, {transform_indices = @transform_3, window_bounds = array<i64: 128, 1>}, {pipeline_mode = #tpu.pipeline_mode<synchronous>, transform_indices = @transform_4, window_bounds = array<i64: 1, 128>}, {transform_indices = @transform_5, window_bounds = array<i64: 128, 128>}, {pipeline_mode = #tpu.pipeline_mode<synchronous>, transform_indices = @transform_6, window_bounds = array<i64: 8, 256>}]} {
    %c0_i32 = arith.constant 0 : i32
    %0 = arith.cmpi eq, %arg0, %c0_i32 : i32
    %c0_i32_0 = arith.constant 0 : i32
    %1 = arith.cmpi eq, %arg1, %c0_i32_0 : i32
    %2 = arith.andi %0, %1 : i1
    %3 = arith.extui %2 : i1 to i32
    %c0_i32_1 = arith.constant 0 : i32
    %4 = arith.cmpi ne, %3, %c0_i32_1 : i32
    scf.if %4 {
      %cst_16 = arith.constant 0.000000e+00 : f32
      %27 = vector.broadcast %cst_16 : f32 to vector<8x256xf32>
      %c0_17 = arith.constant 0 : index
      %c0_18 = arith.constant 0 : index
      %28 = vector.load %arg8[%c0_17, %c0_18] : memref<8x256xf32, #tpu.memory_space<vmem>>, vector<8x256xf32>
      tpu.vector_store %arg8[%c0_17, %c0_18], %27 {strides = array<i32>} : memref<8x256xf32, #tpu.memory_space<vmem>>, vector<8x256xf32>,
    } else {
    }
    %c0_i32_2 = arith.constant 0 : i32
    %5 = arith.cmpi eq, %arg1, %c0_i32_2 : i32
    %6 = arith.extui %5 : i1 to i32
    %c0_i32_3 = arith.constant 0 : i32
    %7 = arith.cmpi ne, %6, %c0_i32_3 : i32
    scf.if %7 {
      %cst_16 = arith.constant 0.000000e+00 : f32
      %27 = vector.broadcast %cst_16 : f32 to vector<128x128xf32>
      %c0_17 = arith.constant 0 : index
      %c0_18 = arith.constant 0 : index
      %28 = vector.load %arg9[%c0_17, %c0_18] : memref<128x128xf32, #tpu.memory_space<vmem>>, vector<128x128xf32>
      tpu.vector_store %arg9[%c0_17, %c0_18], %27 {strides = array<i32>} : memref<128x128xf32, #tpu.memory_space<vmem>>, vector<128x128xf32>,
    } else {
    }
    %c0 = arith.constant 0 : index
    %c0_4 = arith.constant 0 : index
    %8 = vector.load %arg2[%c0, %c0_4] : memref<128x128xbf16, #tpu.memory_space<vmem>>, vector<128x128xbf16>
    %c128_i32 = arith.constant 128 : i32
    %9 = arith.muli %arg1, %c128_i32 : i32
    %10 = tpu.assume_multiple %9, 128 : i32
    %11 = arith.index_cast %10 : i32 to index
    %c0_5 = arith.constant 0 : index
    %12 = vector.load %arg3[%11, %c0_5] : memref<256x128xbf16, #tpu.memory_space<vmem>>, vector<128x128xbf16>
    %c0_6 = arith.constant 0 : index
    %c0_7 = arith.constant 0 : index
    %13 = vector.load %arg9[%c0_6, %c0_7] : memref<128x128xf32, #tpu.memory_space<vmem>>, vector<128x128xf32>
    %cst = arith.constant dense<0.000000e+00> : vector<128x128xf32>
    %14 = tpu.matmul %8, %12, %cst {dimension_numbers = #tpu.dot_dimension_numbers<[1], [0], [0], [1], [0, 0, 1, 1], [], []>} : vector<128x128xbf16>, vector<128x128xbf16>, vector<128x128xf32> -> vector<128x128xf32>
    %15 = arith.addf %13, %14 : vector<128x128xf32>
    %c0_8 = arith.constant 0 : index
    %c0_9 = arith.constant 0 : index
    %16 = vector.load %arg9[%c0_8, %c0_9] : memref<128x128xf32, #tpu.memory_space<vmem>>, vector<128x128xf32>
    tpu.vector_store %arg9[%c0_8, %c0_9], %15 {strides = array<i32>} : memref<128x128xf32, #tpu.memory_space<vmem>>, vector<128x128xf32>,
    %c0_10 = arith.constant 0 : index
    %17 = arith.index_cast %10 : i32 to index
    %18 = vector.load %arg8[%c0_10, %17] : memref<8x256xf32, #tpu.memory_space<vmem>>, vector<8x128xf32>
    %c0_11 = arith.constant 0 : index
    %c0_12 = arith.constant 0 : index
    %19 = vector.load %arg4[%c0_11, %c0_12] : memref<8x128xbf16, #tpu.memory_space<vmem>>, vector<8x128xbf16>
    %cst_13 = arith.constant dense<0.000000e+00> : vector<8x128xf32>
    %20 = tpu.matmul %19, %8, %cst_13 {dimension_numbers = #tpu.dot_dimension_numbers<[1], [0], [0], [1], [0, 0, 1, 1], [], []>} : vector<8x128xbf16>, vector<128x128xbf16>, vector<8x128xf32> -> vector<8x128xf32>
    %21 = arith.addf %18, %20 : vector<8x128xf32>
    %c0_14 = arith.constant 0 : index
    %22 = arith.index_cast %10 : i32 to index
    %23 = vector.load %arg8[%c0_14, %22] : memref<8x256xf32, #tpu.memory_space<vmem>>, vector<8x128xf32>
    tpu.vector_store %arg8[%c0_14, %22], %21 {strides = array<i32>} : memref<8x256xf32, #tpu.memory_space<vmem>>, vector<8x128xf32>,
    %c1_i32 = arith.constant 1 : i32
    %24 = arith.cmpi eq, %arg1, %c1_i32 : i32
    %25 = arith.extui %24 : i1 to i32
    %c0_i32_15 = arith.constant 0 : i32
    %26 = arith.cmpi ne, %25, %c0_i32_15 : i32
    scf.if %26 {
      %c0_16 = arith.constant 0 : index
      %c0_17 = arith.constant 0 : index
      %27 = vector.load %arg5[%c0_16, %c0_17] : memref<128x1xf32, #tpu.memory_space<vmem>>, vector<128x1xf32>
      %c0_18 = arith.constant 0 : index
      %c0_19 = arith.constant 0 : index
      %28 = vector.load %arg9[%c0_18, %c0_19] : memref<128x128xf32, #tpu.memory_space<vmem>>, vector<128x128xf32>
      %29 = vector.broadcast %27 : vector<128x1xf32> to vector<128x128xf32>
      %30 = arith.mulf %28, %29 : vector<128x128xf32>
      %c0_20 = arith.constant 0 : index
      %c0_21 = arith.constant 0 : index
      %31 = vector.load %arg6[%c0_20, %c0_21] : memref<1x128xf32, #tpu.memory_space<vmem>>, vector<1x128xf32>
      %32 = vector.broadcast %31 : vector<1x128xf32> to vector<128x128xf32>
      %33 = arith.addf %30, %32 : vector<128x128xf32>
      %cst_22 = arith.constant 0.000000e+00 : f32
      %34 = vector.broadcast %cst_22 : f32 to vector<128x128xf32>
      %35 = arith.maximumf %33, %34 : vector<128x128xf32>
      %36 = vector.broadcast %27 : vector<128x1xf32> to vector<128x128xf32>
      %37 = arith.mulf %35, %36 : vector<128x128xf32>
      %38 = arith.truncf %37 : vector<128x128xf32> to vector<128x128xbf16>
      %c0_23 = arith.constant 0 : index
      %c0_24 = arith.constant 0 : index
      %39 = vector.load %arg7[%c0_23, %c0_24] : memref<128x128xbf16, #tpu.memory_space<vmem>>, vector<128x128xbf16>
      tpu.vector_store %arg7[%c0_23, %c0_24], %38 {strides = array<i32>} : memref<128x128xbf16, #tpu.memory_space<vmem>>, vector<128x128xbf16>,
    } else {
    }
    return
  }
  func.func @transform_0(%arg0: i32, %arg1: i32) -> (i32, i32) {
    %c0_i32 = arith.constant 0 : i32
    return %arg0, %arg1 : i32, i32
  }
  func.func @transform_1(%arg0: i32, %arg1: i32) -> (i32, i32) {
    %c0_i32 = arith.constant 0 : i32
    %c0_i32_0 = arith.constant 0 : i32
    %c0_i32_1 = arith.constant 0 : i32
    return %c0_i32, %c0_i32_0 : i32, i32
  }
  func.func @transform_2(%arg0: i32, %arg1: i32) -> (i32, i32) {
    %c0_i32 = arith.constant 0 : i32
    %c0_i32_0 = arith.constant 0 : i32
    return %c0_i32, %arg0 : i32, i32
  }
  func.func @transform_3(%arg0: i32, %arg1: i32) -> (i32, i32) {
    %c0_i32 = arith.constant 0 : i32
    %c0_i32_0 = arith.constant 0 : i32
    return %arg0, %c0_i32 : i32, i32
  }
  func.func @transform_4(%arg0: i32, %arg1: i32) -> (i32, i32) {
    %c0_i32 = arith.constant 0 : i32
    %c0_i32_0 = arith.constant 0 : i32
    %c0_i32_1 = arith.constant 0 : i32
    return %c0_i32, %c0_i32_0 : i32, i32
  }
  func.func @transform_5(%arg0: i32, %arg1: i32) -> (i32, i32) {
    %c0_i32 = arith.constant 0 : i32
    %c0_i32_0 = arith.constant 0 : i32
    return %arg0, %c0_i32 : i32, i32
  }
  func.func @transform_6(%arg0: i32, %arg1: i32) -> (i32, i32) {
    %c0_i32 = arith.constant 0 : i32
    %c0_i32_0 = arith.constant 0 : i32
    %c0_i32_1 = arith.constant 0 : i32
    return %c0_i32, %c0_i32_0 : i32, i32
  }
}

module attributes {stable_mosaic.version = 11 : i64} {
  func.func @_pool_heads_kernel(%arg0: i32, %arg1: memref<8x256xf32, #tpu.memory_space<vmem>>, %arg2: memref<128x128xbf16, #tpu.memory_space<vmem>>, %arg3: memref<128x256xbf16, #tpu.memory_space<vmem>>, %arg4: memref<1x256xf32, #tpu.memory_space<vmem>>, %arg5: memref<256x128xbf16, #tpu.memory_space<vmem>>, %arg6: memref<1x128xf32, #tpu.memory_space<vmem>>, %arg7: memref<8x256xf32, #tpu.memory_space<vmem>>, %arg8: memref<8x128xf32, #tpu.memory_space<vmem>>, %arg9: memref<8x128xf32, #tpu.memory_space<vmem>>) attributes {dimension_semantics = [#tpu.dimension_semantics<arbitrary>], iteration_bounds = array<i64: 2>, scalar_prefetch = 0 : i64, scratch_operands = 1 : i64, tpu.core_type = #tpu.core_type<tc>, window_params = [{pipeline_mode = #tpu.pipeline_mode<synchronous>, transform_indices = @transform_0, window_bounds = array<i64: 8, 256>}, {transform_indices = @transform_1, window_bounds = array<i64: 128, 128>}, {pipeline_mode = #tpu.pipeline_mode<synchronous>, transform_indices = @transform_2, window_bounds = array<i64: 128, 256>}, {pipeline_mode = #tpu.pipeline_mode<synchronous>, transform_indices = @transform_3, window_bounds = array<i64: 1, 256>}, {pipeline_mode = #tpu.pipeline_mode<synchronous>, transform_indices = @transform_4, window_bounds = array<i64: 256, 128>}, {pipeline_mode = #tpu.pipeline_mode<synchronous>, transform_indices = @transform_5, window_bounds = array<i64: 1, 128>}, {pipeline_mode = #tpu.pipeline_mode<synchronous>, transform_indices = @transform_6, window_bounds = array<i64: 8, 256>}, {pipeline_mode = #tpu.pipeline_mode<synchronous>, transform_indices = @transform_7, window_bounds = array<i64: 8, 128>}]} {
    %c0_i32 = arith.constant 0 : i32
    %0 = arith.cmpi eq, %arg0, %c0_i32 : i32
    %1 = arith.extui %0 : i1 to i32
    %c0_i32_0 = arith.constant 0 : i32
    %2 = arith.cmpi ne, %1, %c0_i32_0 : i32
    scf.if %2 {
      %cst_8 = arith.constant 0.000000e+00 : f32
      %16 = vector.broadcast %cst_8 : f32 to vector<8x128xf32>
      %c0_9 = arith.constant 0 : index
      %c0_10 = arith.constant 0 : index
      %17 = vector.load %arg9[%c0_9, %c0_10] : memref<8x128xf32, #tpu.memory_space<vmem>>, vector<8x128xf32>
      tpu.vector_store %arg9[%c0_9, %c0_10], %16 {strides = array<i32>} : memref<8x128xf32, #tpu.memory_space<vmem>>, vector<8x128xf32>,
    } else {
    }
    %c128_i32 = arith.constant 128 : i32
    %3 = arith.muli %arg0, %c128_i32 : i32
    %4 = tpu.assume_multiple %3, 128 : i32
    %c0 = arith.constant 0 : index
    %5 = arith.index_cast %4 : i32 to index
    %6 = vector.load %arg1[%c0, %5] : memref<8x256xf32, #tpu.memory_space<vmem>>, vector<8x128xf32>
    %7 = arith.truncf %6 : vector<8x128xf32> to vector<8x128xbf16>
    %c0_1 = arith.constant 0 : index
    %c0_2 = arith.constant 0 : index
    %8 = vector.load %arg9[%c0_1, %c0_2] : memref<8x128xf32, #tpu.memory_space<vmem>>, vector<8x128xf32>
    %c0_3 = arith.constant 0 : index
    %c0_4 = arith.constant 0 : index
    %9 = vector.load %arg2[%c0_3, %c0_4] : memref<128x128xbf16, #tpu.memory_space<vmem>>, vector<128x128xbf16>
    %cst = arith.constant dense<0.000000e+00> : vector<8x128xf32>
    %10 = tpu.matmul %7, %9, %cst {dimension_numbers = #tpu.dot_dimension_numbers<[1], [0], [0], [1], [0, 0, 1, 1], [], []>} : vector<8x128xbf16>, vector<128x128xbf16>, vector<8x128xf32> -> vector<8x128xf32>
    %11 = arith.addf %8, %10 : vector<8x128xf32>
    %c0_5 = arith.constant 0 : index
    %c0_6 = arith.constant 0 : index
    %12 = vector.load %arg9[%c0_5, %c0_6] : memref<8x128xf32, #tpu.memory_space<vmem>>, vector<8x128xf32>
    tpu.vector_store %arg9[%c0_5, %c0_6], %11 {strides = array<i32>} : memref<8x128xf32, #tpu.memory_space<vmem>>, vector<8x128xf32>,
    %c1_i32 = arith.constant 1 : i32
    %13 = arith.cmpi eq, %arg0, %c1_i32 : i32
    %14 = arith.extui %13 : i1 to i32
    %c0_i32_7 = arith.constant 0 : i32
    %15 = arith.cmpi ne, %14, %c0_i32_7 : i32
    scf.if %15 {
      %c0_8 = arith.constant 0 : index
      %c0_9 = arith.constant 0 : index
      %16 = vector.load %arg9[%c0_8, %c0_9] : memref<8x128xf32, #tpu.memory_space<vmem>>, vector<8x128xf32>
      %17 = arith.truncf %16 : vector<8x128xf32> to vector<8x128xbf16>
      %c0_10 = arith.constant 0 : index
      %c0_11 = arith.constant 0 : index
      %18 = vector.load %arg3[%c0_10, %c0_11] : memref<128x256xbf16, #tpu.memory_space<vmem>>, vector<128x256xbf16>
      %cst_12 = arith.constant dense<0.000000e+00> : vector<8x256xf32>
      %19 = tpu.matmul %17, %18, %cst_12 {dimension_numbers = #tpu.dot_dimension_numbers<[1], [0], [0], [1], [0, 0, 1, 1], [], []>} : vector<8x128xbf16>, vector<128x256xbf16>, vector<8x256xf32> -> vector<8x256xf32>
      %c0_13 = arith.constant 0 : index
      %c0_14 = arith.constant 0 : index
      %20 = vector.load %arg4[%c0_13, %c0_14] : memref<1x256xf32, #tpu.memory_space<vmem>>, vector<1x256xf32>
      %21 = vector.broadcast %20 : vector<1x256xf32> to vector<8x256xf32>
      %22 = arith.addf %19, %21 : vector<8x256xf32>
      %c0_15 = arith.constant 0 : index
      %c0_16 = arith.constant 0 : index
      %23 = vector.load %arg7[%c0_15, %c0_16] : memref<8x256xf32, #tpu.memory_space<vmem>>, vector<8x256xf32>
      tpu.vector_store %arg7[%c0_15, %c0_16], %22 {strides = array<i32>} : memref<8x256xf32, #tpu.memory_space<vmem>>, vector<8x256xf32>,
      %24 = arith.truncf %22 : vector<8x256xf32> to vector<8x256xbf16>
      %c0_17 = arith.constant 0 : index
      %c0_18 = arith.constant 0 : index
      %25 = vector.load %arg5[%c0_17, %c0_18] : memref<256x128xbf16, #tpu.memory_space<vmem>>, vector<256x128xbf16>
      %cst_19 = arith.constant dense<0.000000e+00> : vector<8x128xf32>
      %26 = tpu.matmul %24, %25, %cst_19 {dimension_numbers = #tpu.dot_dimension_numbers<[1], [0], [0], [1], [0, 0, 1, 1], [], []>} : vector<8x256xbf16>, vector<256x128xbf16>, vector<8x128xf32> -> vector<8x128xf32>
      %c0_20 = arith.constant 0 : index
      %c0_21 = arith.constant 0 : index
      %27 = vector.load %arg6[%c0_20, %c0_21] : memref<1x128xf32, #tpu.memory_space<vmem>>, vector<1x128xf32>
      %28 = vector.broadcast %27 : vector<1x128xf32> to vector<8x128xf32>
      %29 = arith.addf %26, %28 : vector<8x128xf32>
      %c0_22 = arith.constant 0 : index
      %c0_23 = arith.constant 0 : index
      %30 = vector.load %arg8[%c0_22, %c0_23] : memref<8x128xf32, #tpu.memory_space<vmem>>, vector<8x128xf32>
      tpu.vector_store %arg8[%c0_22, %c0_23], %29 {strides = array<i32>} : memref<8x128xf32, #tpu.memory_space<vmem>>, vector<8x128xf32>,
    } else {
    }
    return
  }
  func.func @transform_0(%arg0: i32) -> (i32, i32) {
    %c0_i32 = arith.constant 0 : i32
    %c0_i32_0 = arith.constant 0 : i32
    %c0_i32_1 = arith.constant 0 : i32
    return %c0_i32, %c0_i32_0 : i32, i32
  }
  func.func @transform_1(%arg0: i32) -> (i32, i32) {
    %c0_i32 = arith.constant 0 : i32
    %c0_i32_0 = arith.constant 0 : i32
    return %arg0, %c0_i32 : i32, i32
  }
  func.func @transform_2(%arg0: i32) -> (i32, i32) {
    %c0_i32 = arith.constant 0 : i32
    %c0_i32_0 = arith.constant 0 : i32
    %c0_i32_1 = arith.constant 0 : i32
    return %c0_i32, %c0_i32_0 : i32, i32
  }
  func.func @transform_3(%arg0: i32) -> (i32, i32) {
    %c0_i32 = arith.constant 0 : i32
    %c0_i32_0 = arith.constant 0 : i32
    %c0_i32_1 = arith.constant 0 : i32
    return %c0_i32, %c0_i32_0 : i32, i32
  }
  func.func @transform_4(%arg0: i32) -> (i32, i32) {
    %c0_i32 = arith.constant 0 : i32
    %c0_i32_0 = arith.constant 0 : i32
    %c0_i32_1 = arith.constant 0 : i32
    return %c0_i32, %c0_i32_0 : i32, i32
  }
  func.func @transform_5(%arg0: i32) -> (i32, i32) {
    %c0_i32 = arith.constant 0 : i32
    %c0_i32_0 = arith.constant 0 : i32
    %c0_i32_1 = arith.constant 0 : i32
    return %c0_i32, %c0_i32_0 : i32, i32
  }
  func.func @transform_6(%arg0: i32) -> (i32, i32) {
    %c0_i32 = arith.constant 0 : i32
    %c0_i32_0 = arith.constant 0 : i32
    %c0_i32_1 = arith.constant 0 : i32
    return %c0_i32, %c0_i32_0 : i32, i32
  }
  func.func @transform_7(%arg0: i32) -> (i32, i32) {
    %c0_i32 = arith.constant 0 : i32
    %c0_i32_0 = arith.constant 0 : i32
    %c0_i32_1 = arith.constant 0 : i32
    return %c0_i32, %c0_i32_0 : i32, i32
  }
}

</mosaic_0001>

<llo_original>
// kernel: hierarchical_malware_gnn_forward.3
$region0: #{hierarchical_malware_gnn_forward.3}
  #allocation0 [shape = 'u32[]', space=smem, size = 0x4, offset = 0x4, fixed_abs, tag = 'smem constant byte address 0x4 - core index']
  #allocation1 [shape = 'u32[144,128]{1,0:T(1,128)}', space=vmem, size = 0x12000, scoped, tag = 'internal scratch']
  %s0 = inlined_call_operand.vmem [shape: bf16[256,128], index: 0, kind: input, shape index: {}]
  %s1 = inlined_call_operand.vmem [shape: bf16[128,128], index: 1, kind: input, shape index: {}]
  %s2 = inlined_call_operand.vmem [shape: bf16[256,128], index: 2, kind: output, shape index: {}]
  %s3 = sld [smem:[#allocation0]]
  $region41: #{hierarchical_malware_gnn_forward.3} parent=0
    _
  %s5 = ssub.s32 1, %s3
  %s6 = scalar_select 0, %s5, %s3
  loop: start=0, step=1, limit=4
  $region2: #{hierarchical_malware_gnn_forward.3} parent=0 // loop_pre_header
    _
  $region3: #{hierarchical_malware_gnn_forward.3} parent=0 // loop_header
    %s8 = sphi 0, %s12
    %p9 = scmp.ge.s32.totalorder %s8, 4
    %s18 = sphi 0, %s20
    %s21 = sphi 0, %s18
    %s22 = sphi 0, %s21
    %s38 = sphi 0, %s22
    %s42 = sphi 0, %s42
    %s44 = sphi 0, %s42
    %s45 = sphi 0, %s44
    %s59 = sphi 0, %s45
    %s65 = sphi 0, %s67
    %s68 = sphi 0, %s65
    %s69 = sphi 0, %s68
    %s85 = sphi 0, %s69
  $region4: #{hierarchical_malware_gnn_forward.3} parent=0 // loop_header_branch
    %11 = sbr.rel (%p9) target = $region8
  $region5: #{hierarchical_malware_gnn_forward.3} parent=0 // loop_body
    %s13 = ssub.s32 %s8, 1
    %s14 = ssub.s32 %s8, 2
    %s15 = sadd.s32 %s8, 1
    %s16 = ssub.s32 %s8, %s15
    %p17 = scmp.eq.s32.totalorder %s16, 0
    %s19 = sadd.s32 %s18, 1
    %s20 = scalar_select %p17, %s18, %s19
    %p23 = pneg %p17
    %p24 = scmp.eq.s32.totalorder %s8, 1
    %p25 = por %p23, %p24
    %p26 = scmp.ne.s32.totalorder %s18, %s21
    %p27 = scmp.eq.s32.totalorder %s8, 0
    %p28 = por %p26, %p27
    %p29 = scmp.ne.s32.totalorder %s18, %s21
    %p30 = scmp.eq.s32.totalorder %s13, 1
    %p31 = por %p29, %p30
    %p32 = scmp.ne.s32.totalorder %s21, %s22
    %p33 = scmp.eq.s32.totalorder %s13, 0
    %p34 = por %p32, %p33
    %p35 = scmp.ne.s32.totalorder %s21, %s22
    %p36 = scmp.eq.s32.totalorder %s14, 1
    %p37 = por %p35, %p36
    %p39 = scmp.ne.s32.totalorder %s22, %s38
    %p40 = scmp.eq.s32.totalorder %s14, 0
    %p41 = por %p39, %p40
    %s43 = sadd.s32 %s42, 1
    %p46 = scmp.eq.s32.totalorder %s8, 1
    %p47 = scmp.ne.s32.totalorder %s42, %s44
    %p48 = scmp.eq.s32.totalorder %s8, 0
    %p49 = por %p47, %p48
    %p50 = scmp.ne.s32.totalorder %s42, %s44
    %p51 = scmp.eq.s32.totalorder %s13, 1
    %p52 = por %p50, %p51
    %p53 = scmp.ne.s32.totalorder %s44, %s45
    %p54 = scmp.eq.s32.totalorder %s13, 0
    %p55 = por %p53, %p54
    %p56 = scmp.ne.s32.totalorder %s44, %s45
    %p57 = scmp.eq.s32.totalorder %s14, 1
    %p58 = por %p56, %p57
    %p60 = scmp.ne.s32.totalorder %s45, %s59
    %p61 = scmp.eq.s32.totalorder %s14, 0
    %p62 = por %p60, %p61
    %s63 = ssub.s32 %s8, %s15
    %p64 = scmp.eq.s32.totalorder %s63, 0
    %s66 = sadd.s32 %s65, 1
    %s67 = scalar_select %p64, %s65, %s66
    %p70 = pneg %p64
    %p71 = scmp.eq.s32.totalorder %s8, 1
    %p72 = por %p70, %p71
    %p73 = scmp.ne.s32.totalorder %s65, %s68
    %p74 = scmp.eq.s32.totalorder %s8, 0
    %p75 = por %p73, %p74
    %p76 = scmp.ne.s32.totalorder %s65, %s68
    %p77 = scmp.eq.s32.totalorder %s13, 1
    %p78 = por %p76, %p77
    %p79 = scmp.ne.s32.totalorder %s68, %s69
    %p80 = scmp.eq.s32.totalorder %s13, 0
    %p81 = por %p79, %p80
    %p82 = scmp.ne.s32.totalorder %s68, %s69
    %p83 = scmp.eq.s32.totalorder %s14, 1
    %p84 = por %p82, %p83
    %p86 = scmp.ne.s32.totalorder %s69, %s85
    %p87 = scmp.eq.s32.totalorder %s14, 0
    %p88 = por %p86, %p87
    %p89 = scmp.le.s32.totalorder 1, %s8
    %p90 = scmp.lt.s32.totalorder %s8, 3
    %p91 = pnand %p89, %p90
    %p92 = pneg %p91
    // Predicated region
    $region9: #{hierarchical_malware_gnn_forward.3} parent=5 // pred_check
      _
    $region10: #{hierarchical_malware_gnn_forward.3} parent=5 // pred_check_branch
      %94 = sbr.rel (%p91) target = $region12
    $region11: #{hierarchical_malware_gnn_forward.3} parent=5 // pred_region
      %s95 = ssub.s32 %s8, 1
      // Predicated region
      $region13: #{hierarchical_malware_gnn_forward.3} parent=11 // pred_check
        %p96 = pneg %p55
      $region14: #{hierarchical_malware_gnn_forward.3} parent=11 // pred_check_branch
        %98 = sbr.rel (%p96) target = $region16
      $region15: #{hierarchical_malware_gnn_forward.3} parent=11 // pred_region
        _
      $region16: #{hierarchical_malware_gnn_forward.3} parent=11 // pred_fallthru
        _
    $region12: #{hierarchical_malware_gnn_forward.3} parent=5 // pred_fallthru
      _
    %p99 = scmp.lt.s32.totalorder %s8, 2
    // Predicated region
    $region17: #{hierarchical_malware_gnn_forward.3} parent=5 // pred_check
      %p100 = pneg %p99
    $region18: #{hierarchical_malware_gnn_forward.3} parent=5 // pred_check_branch
      %102 = sbr.rel (%p100) target = $region20
    $region19: #{hierarchical_malware_gnn_forward.3} parent=5 // pred_region
      // Predicated region
      $region21: #{hierarchical_malware_gnn_forward.3} parent=19 // pred_check
        %p103 = pneg %p28
      $region22: #{hierarchical_malware_gnn_forward.3} parent=19 // pred_check_branch
        %105 = sbr.rel (%p103) target = $region24
      $region23: #{hierarchical_malware_gnn_forward.3} parent=19 // pred_region
        %s106 = smul.u32 16, %s8
        %p107 = scmp.lt.s32.totalorder %s106, 31
        %s108 = scalar_select %p107, %s106, 31
        %s109 = smul.addr %s108, 4
        %s110 = scalar_lea.vmem %s0, %s109
        %s111 = smul.u32 16, %s8
      $region24: #{hierarchical_malware_gnn_forward.3} parent=19 // pred_fallthru
        _
    $region20: #{hierarchical_malware_gnn_forward.3} parent=5 // pred_fallthru
      _
    %p112 = scmp.le.s32.totalorder 1, %s8
    %p113 = scmp.lt.s32.totalorder %s8, 3
    %p114 = pnand %p112, %p113
    %p115 = pneg %p114
    // Predicated region
    $region25: #{hierarchical_malware_gnn_forward.3} parent=5 // pred_check
      _
    $region26: #{hierarchical_malware_gnn_forward.3} parent=5 // pred_check_branch
      %117 = sbr.rel (%p114) target = $region28
    $region27: #{hierarchical_malware_gnn_forward.3} parent=5 // pred_region
      %s118 = ssub.s32 %s8, 1
      %s119 = smul.u32 16, %s13
      %p120 = scmp.lt.s32.totalorder %s119, 31
      %s121 = scalar_select %p120, %s119, 31
      %s122 = smul.addr %s121, 4
      %s123 = scalar_lea.vmem %s0, %s122
      %p124 = pneg %p34
      %p125 = pneg %p31
      %p126 = pneg %p55
      %p127 = pneg %p52
      %p128 = pneg %p81
      %p129 = pneg %p78
      %s130 = smul.u32 16, %s13
      %p131 = scmp.lt.s32.totalorder %s130, 31
      %s132 = scalar_select %p131, %s130, 31
      %s133 = smul.addr %s132, 4
      %s134 = scalar_lea.vmem %s2, %s133
      %s135 = smul.u32 16, %s13
      %p136 = scmp.lt.s32.totalorder %s135, 31
      %s137 = scalar_select %p136, %s135, 31
      %s138 = smul.addr %s137, 4
      %s139 = scalar_lea.vmem %s0, %s138
      %s140 = smul.u32 16, %s13
      %s141 = smul.u32 16, %s13
      %p142 = scmp.lt.s32.totalorder %s141, 31
      %s143 = scalar_select %p142, %s141, 31
      %s144 = smul.addr %s143, 4
      %s145 = scalar_lea.vmem %s2, %s144
      %s146 = smul.u32 16, %s13
      %v148 = vld [vmem:[%s139] sm:$0xf]
      %v149 = vld [vmem:[%s139 + $0x4] sm:$0xf]
      %v150 = vld [vmem:[%s139 + $0x8] sm:$0xf]
      %v151 = vld [vmem:[%s139 + $0xc] sm:$0xf]
      %v152 = vld [vmem:[%s139 + $0x10] sm:$0xf]
      %v153 = vld [vmem:[%s139 + $0x14] sm:$0xf]
      %v154 = vld [vmem:[%s139 + $0x18] sm:$0xf]
      %v155 = vld [vmem:[%s139 + $0x1c] sm:$0xf]
      %v156 = vld [vmem:[%s139 + $0x20] sm:$0xf]
      %v157 = vld [vmem:[%s139 + $0x24] sm:$0xf]
      %v158 = vld [vmem:[%s139 + $0x28] sm:$0xf]
      %v159 = vld [vmem:[%s139 + $0x2c] sm:$0xf]
      %v160 = vld [vmem:[%s139 + $0x30] sm:$0xf]
      %v161 = vld [vmem:[%s139 + $0x34] sm:$0xf]
      %v162 = vld [vmem:[%s139 + $0x38] sm:$0xf]
      %v163 = vld [vmem:[%s139 + $0x3c] sm:$0xf]
      %v164 = vld [vmem:[%s1] sm:$0xf]
      %v165 = vld [vmem:[%s1 + $0x4] sm:$0xf]
      %v166 = vld [vmem:[%s1 + $0x8] sm:$0xf]
      %v167 = vld [vmem:[%s1 + $0xc] sm:$0xf]
      %v168 = vld [vmem:[%s1 + $0x10] sm:$0xf]
      %v169 = vld [vmem:[%s1 + $0x14] sm:$0xf]
      %v170 = vld [vmem:[%s1 + $0x18] sm:$0xf]
      %v171 = vld [vmem:[%s1 + $0x1c] sm:$0xf]
      %v172 = vld [vmem:[%s1 + $0x20] sm:$0xf]
      %v173 = vld [vmem:[%s1 + $0x24] sm:$0xf]
      %v174 = vld [vmem:[%s1 + $0x28] sm:$0xf]
      %v175 = vld [vmem:[%s1 + $0x2c] sm:$0xf]
      %v176 = vld [vmem:[%s1 + $0x30] sm:$0xf]
      %v177 = vld [vmem:[%s1 + $0x34] sm:$0xf]
      %v178 = vld [vmem:[%s1 + $0x38] sm:$0xf]
      %v179 = vld [vmem:[%s1 + $0x3c] sm:$0xf]
      %v196 = vunpack.c.l.b16 %v148
      %v197 = vunpack.c.l.b16 %v149
      %v198 = vunpack.c.l.b16 %v150
      %v199 = vunpack.c.l.b16 %v151
      %v200 = vunpack.c.l.b16 %v152
      %v201 = vunpack.c.l.b16 %v153
      %v202 = vunpack.c.l.b16 %v154
      %v203 = vunpack.c.l.b16 %v155
      %v204 = vunpack.c.l.b16 %v156
      %v205 = vunpack.c.l.b16 %v157
      %v206 = vunpack.c.l.b16 %v158
      %v207 = vunpack.c.l.b16 %v159
      %v208 = vunpack.c.l.b16 %v160
      %v209 = vunpack.c.l.b16 %v161
      %v210 = vunpack.c.l.b16 %v162
      %v211 = vunpack.c.l.b16 %v163
      %v212 = vpack.c.b16 %v197, %v196
      %v213 = vpack.c.b16 %v199, %v198
      %v214 = vpack.c.b16 %v201, %v200
      %v215 = vpack.c.b16 %v203, %v202
      %v216 = vpack.c.b16 %v205, %v204
      %v217 = vpack.c.b16 %v207, %v206
      %v218 = vpack.c.b16 %v209, %v208
      %v219 = vpack.c.b16 %v211, %v210
      %v244 = vunpack.c.l.b16 %v164
      %v245 = vunpack.c.l.b16 %v165
      %v246 = vunpack.c.l.b16 %v166
      %v247 = vunpack.c.l.b16 %v167
      %v248 = vunpack.c.l.b16 %v168
      %v249 = vunpack.c.l.b16 %v169
      %v250 = vunpack.c.l.b16 %v170
      %v251 = vunpack.c.l.b16 %v171
      %v252 = vunpack.c.l.b16 %v172
      %v253 = vunpack.c.l.b16 %v173
      %v254 = vunpack.c.l.b16 %v174
      %v255 = vunpack.c.l.b16 %v175
      %v256 = vunpack.c.l.b16 %v176
      %v257 = vunpack.c.l.b16 %v177
      %v258 = vunpack.c.l.b16 %v178
      %v259 = vunpack.c.l.b16 %v179
      %v260 = vpack.c.b16 %v245, %v244
      %v261 = vpack.c.b16 %v247, %v246
      %v262 = vpack.c.b16 %v249, %v248
      %v263 = vpack.c.b16 %v251, %v250
      %v264 = vpack.c.b16 %v253, %v252
      %v265 = vpack.c.b16 %v255, %v254
      %v266 = vpack.c.b16 %v257, %v256
      %v267 = vpack.c.b16 %v259, %v258
      %276 = vmatprep.subr.bf16.mxu0 0
      %277 = vmatpush1.bf16.msra.mxu0 %v267
      %278 = vmatprep.subr.bf16.mxu0 0
      %279 = vmatpush1.bf16.msra.mxu0 %v266
      %280 = vmatprep.subr.bf16.mxu0 0
      %281 = vmatpush1.bf16.msra.mxu0 %v265
      %282 = vmatprep.subr.bf16.mxu0 0
      %283 = vmatpush1.bf16.msra.mxu0 %v264
      %284 = vmatprep.subr.bf16.mxu0 0
      %285 = vmatpush1.bf16.msra.mxu0 %v263
      %286 = vmatprep.subr.bf16.mxu0 0
      %287 = vmatpush1.bf16.msra.mxu0 %v262
      %288 = vmatprep.subr.bf16.mxu0 0
      %289 = vmatpush1.bf16.msra.mxu0 %v261
      %290 = vmatprep.subr.bf16.mxu0 0
      %291 = vmatpush1.bf16.msra.mxu0 %v260
      %292 = vmatprep.subr.bf16.mxu0 0
      %293 = vmatpush2.bf16.msra.mxu0 0
      %294 = vmatprep.subr.bf16.mxu0 0
      %295 = vmatpush2.bf16.msra.mxu0 0
      %296 = vmatprep.subr.bf16.mxu0 0
      %297 = vmatpush2.bf16.msra.mxu0 0
      %298 = vmatprep.subr.bf16.mxu0 0
      %299 = vmatpush2.bf16.msra.mxu0 0
      %300 = vmatprep.subr.bf16.mxu0 0
      %301 = vmatpush2.bf16.msra.mxu0 0
      %302 = vmatprep.subr.bf16.mxu0 0
      %303 = vmatpush2.bf16.msra.mxu0 0
      %304 = vmatprep.subr.bf16.mxu0 0
      %305 = vmatpush2.bf16.msra.mxu0 0
      %306 = vmatprep.subr.bf16.mxu0 0
      %307 = vmatpush2.bf16.msra.mxu0 0
      %308 = vmatprep.mubr.bf16.mxu0 0
      %309 = vmatmul.mubr.bf16.gmra.mxu0 %v212
      %v310 = vpop.f32.mrf.mxu0
      %v311 = vadd.f32 0.0, %v310
      %v312 = vpop.f32.mrf.mxu0
      %v313 = vpop.f32.mrf.mxu0
      %v314 = vadd.f32 0.0, %v313
      %v315 = vpop.f32.mrf.mxu0
      %316 = vmatprep.mubr.bf16.mxu0 0
      %317 = vmatmul.mubr.bf16.gmra.mxu0 %v213
      %v318 = vpop.f32.mrf.mxu0
      %v319 = vadd.f32 0.0, %v318
      %v320 = vpop.f32.mrf.mxu0
      %v321 = vpop.f32.mrf.mxu0
      %v322 = vadd.f32 0.0, %v321
      %v323 = vpop.f32.mrf.mxu0
      %324 = vmatprep.mubr.bf16.mxu0 0
      %325 = vmatmul.mubr.bf16.gmra.mxu0 %v214
      %v326 = vpop.f32.mrf.mxu0
      %v327 = vadd.f32 0.0, %v326
      %v328 = vpop.f32.mrf.mxu0
      %v329 = vpop.f32.mrf.mxu0
      %v330 = vadd.f32 0.0, %v329
      %v331 = vpop.f32.mrf.mxu0
      %332 = vmatprep.mubr.bf16.mxu0 0
      %333 = vmatmul.mubr.bf16.gmra.mxu0 %v215
      %v334 = vpop.f32.mrf.mxu0
      %v335 = vadd.f32 0.0, %v334
      %v336 = vpop.f32.mrf.mxu0
      %v337 = vpop.f32.mrf.mxu0
      %v338 = vadd.f32 0.0, %v337
      %v339 = vpop.f32.mrf.mxu0
      %340 = vmatprep.mubr.bf16.mxu0 0
      %341 = vmatmul.mubr.bf16.gmra.mxu0 %v216
      %v342 = vpop.f32.mrf.mxu0
      %v343 = vadd.f32 0.0, %v342
      %v344 = vpop.f32.mrf.mxu0
      %v345 = vpop.f32.mrf.mxu0
      %v346 = vadd.f32 0.0, %v345
      %v347 = vpop.f32.mrf.mxu0
      %348 = vmatprep.mubr.bf16.mxu0 0
      %349 = vmatmul.mubr.bf16.gmra.mxu0 %v217
      %v350 = vpop.f32.mrf.mxu0
      %v351 = vadd.f32 0.0, %v350
      %v352 = vpop.f32.mrf.mxu0
      %v353 = vpop.f32.mrf.mxu0
      %v354 = vadd.f32 0.0, %v353
      %v355 = vpop.f32.mrf.mxu0
      %356 = vmatprep.mubr.bf16.mxu0 0
      %357 = vmatmul.mubr.bf16.gmra.mxu0 %v218
      %v358 = vpop.f32.mrf.mxu0
      %v359 = vadd.f32 0.0, %v358
      %v360 = vpop.f32.mrf.mxu0
      %v361 = vpop.f32.mrf.mxu0
      %v362 = vadd.f32 0.0, %v361
      %v363 = vpop.f32.mrf.mxu0
      %364 = vmatprep.mubr.bf16.mxu0 0
      %365 = vmatmul.mubr.bf16.gmra.mxu0 %v219
      %v366 = vpop.f32.mrf.mxu0
      %v367 = vadd.f32 0.0, %v366
      %v368 = vpop.f32.mrf.mxu0
      %v369 = vpop.f32.mrf.mxu0
      %v370 = vadd.f32 0.0, %v369
      %v371 = vpop.f32.mrf.mxu0
      %372 = vdwg.mxu0
      %v373 = vpack.c.bf16 %v314, %v311
      %v374 = vpack.c.bf16 %v322, %v319
      %v375 = vpack.c.bf16 %v330, %v327
      %v376 = vpack.c.bf16 %v338, %v335
      %v377 = vpack.c.bf16 %v346, %v343
      %v378 = vpack.c.bf16 %v354, %v351
      %v379 = vpack.c.bf16 %v362, %v359
      %v380 = vpack.c.bf16 %v370, %v367
      %v389 = vunpack.c.l.b16 %v373
      %v390 = vunpack.c.h.b16 %v373
      %v391 = vunpack.c.l.b16 %v374
      %v392 = vunpack.c.h.b16 %v374
      %v393 = vunpack.c.l.b16 %v375
      %v394 = vunpack.c.h.b16 %v375
      %v395 = vunpack.c.l.b16 %v376
      %v396 = vunpack.c.h.b16 %v376
      %v397 = vunpack.c.l.b16 %v377
      %v398 = vunpack.c.h.b16 %v377
      %v399 = vunpack.c.l.b16 %v378
      %v400 = vunpack.c.h.b16 %v378
      %v401 = vunpack.c.l.b16 %v379
      %v402 = vunpack.c.h.b16 %v379
      %v403 = vunpack.c.l.b16 %v380
      %v404 = vunpack.c.h.b16 %v380
      %v405 = vpack.c.b16 %v389, %v389
      %v406 = vpack.c.b16 %v390, %v390
      %v407 = vpack.c.b16 %v391, %v391
      %v408 = vpack.c.b16 %v392, %v392
      %v409 = vpack.c.b16 %v393, %v393
      %v410 = vpack.c.b16 %v394, %v394
      %v411 = vpack.c.b16 %v395, %v395
      %v412 = vpack.c.b16 %v396, %v396
      %v413 = vpack.c.b16 %v397, %v397
      %v414 = vpack.c.b16 %v398, %v398
      %v415 = vpack.c.b16 %v399, %v399
      %v416 = vpack.c.b16 %v400, %v400
      %v417 = vpack.c.b16 %v401, %v401
      %v418 = vpack.c.b16 %v402, %v402
      %v419 = vpack.c.b16 %v403, %v403
      %v420 = vpack.c.b16 %v404, %v404
      %437 = vst [vmem:[%s145] sm:$0xf] %v405
      %438 = vst [vmem:[%s145 + $0x4] sm:$0xf] %v406
      %439 = vst [vmem:[%s145 + $0x8] sm:$0xf] %v407
      %440 = vst [vmem:[%s145 + $0xc] sm:$0xf] %v408
      %441 = vst [vmem:[%s145 + $0x10] sm:$0xf] %v409
      %442 = vst [vmem:[%s145 + $0x14] sm:$0xf] %v410
      %443 = vst [vmem:[%s145 + $0x18] sm:$0xf] %v411
      %444 = vst [vmem:[%s145 + $0x1c] sm:$0xf] %v412
      %445 = vst [vmem:[%s145 + $0x20] sm:$0xf] %v413
      %446 = vst [vmem:[%s145 + $0x24] sm:$0xf] %v414
      %447 = vst [vmem:[%s145 + $0x28] sm:$0xf] %v415
      %448 = vst [vmem:[%s145 + $0x2c] sm:$0xf] %v416
      %449 = vst [vmem:[%s145 + $0x30] sm:$0xf] %v417
      %450 = vst [vmem:[%s145 + $0x34] sm:$0xf] %v418
      %451 = vst [vmem:[%s145 + $0x38] sm:$0xf] %v419
      %452 = vst [vmem:[%s145 + $0x3c] sm:$0xf] %v420
      %s453 = smul.u32 16, %s13
      %p454 = scmp.lt.s32.totalorder %s453, 31
      %s455 = scalar_select %p454, %s453, 31
      %s456 = smul.addr %s455, 4
      %s457 = scalar_lea.vmem %s2, %s456
      // Predicated region
      $region29: #{hierarchical_malware_gnn_forward.3} parent=27 // pred_check
        %p458 = pneg %p78
      $region30: #{hierarchical_malware_gnn_forward.3} parent=27 // pred_check_branch
        %460 = sbr.rel (%p458) target = $region32
      $region31: #{hierarchical_malware_gnn_forward.3} parent=27 // pred_region
        %s461 = smul.u32 16, %s13
      $region32: #{hierarchical_malware_gnn_forward.3} parent=27 // pred_fallthru
        _
    $region28: #{hierarchical_malware_gnn_forward.3} parent=5 // pred_fallthru
      _
    %p462 = scmp.le.s32.totalorder 2, %s8
    // Predicated region
    $region33: #{hierarchical_malware_gnn_forward.3} parent=5 // pred_check
      %p463 = pneg %p462
    $region34: #{hierarchical_malware_gnn_forward.3} parent=5 // pred_check_branch
      %465 = sbr.rel (%p463) target = $region36
    $region35: #{hierarchical_malware_gnn_forward.3} parent=5 // pred_region
      %s466 = ssub.s32 %s8, 2
      // Predicated region
      $region37: #{hierarchical_malware_gnn_forward.3} parent=35 // pred_check
        %p467 = pneg %p84
      $region38: #{hierarchical_malware_gnn_forward.3} parent=35 // pred_check_branch
        %469 = sbr.rel (%p467) target = $region40
      $region39: #{hierarchical_malware_gnn_forward.3} parent=35 // pred_region
        %s470 = smul.u32 16, %s14
        %p471 = scmp.lt.s32.totalorder %s470, 31
        %s472 = scalar_select %p471, %s470, 31
        %s473 = smul.addr %s472, 4
        %s474 = scalar_lea.vmem %s2, %s473
      $region40: #{hierarchical_malware_gnn_forward.3} parent=35 // pred_fallthru
        _
    $region36: #{hierarchical_malware_gnn_forward.3} parent=5 // pred_fallthru
      _
  $region6: #{hierarchical_malware_gnn_forward.3} parent=0 // loop_footer
    %s12 = sadd.s32 1, %s8
  $region7: #{hierarchical_malware_gnn_forward.3} parent=0 // loop_footer_branch
    %7 = sbr.rel target = $region3
  $region8: #{hierarchical_malware_gnn_forward.3} parent=0 // loop_exit
    _

// kernel: hierarchical_malware_gnn_forward.4
$region0: #{hierarchical_malware_gnn_forward.4}
  #allocation0 [shape = 'u32[]', space=smem, size = 0x4, offset = 0x4, fixed_abs, tag = 'smem constant byte address 0x4 - core index']
  #allocation1 [shape = 'u32[144,128]{1,0:T(1,128)}', space=vmem, size = 0x12000, scoped, tag = 'internal scratch']
  #allocation2 [shape = 'f32[128,128]{1,0:T(8,128)}', space=vmem, size = 0x10000, scoped, tag = 'scratch operand']
  %s0 = inlined_call_operand.vmem [shape: bf16[256,256], index: 0, kind: input, shape index: {}]
  %s1 = inlined_call_operand.vmem [shape: bf16[256,128], index: 1, kind: input, shape index: {}]
  %s2 = inlined_call_operand.vmem [shape: bf16[8,256], index: 2, kind: input, shape index: {}]
  %s3 = inlined_call_operand.vmem [shape: f32[256,1], index: 3, kind: input, shape index: {}]
  %s4 = inlined_call_operand.vmem [shape: f32[1,128], index: 4, kind: input, shape index: {}]
  %s5 = inlined_call_operand.vmem [shape: bf16[256,128], index: 5, kind: output, shape index: {0}]
  %s6 = inlined_call_operand.vmem [shape: f32[8,256], index: 6, kind: output, shape index: {1}]
  %7 = xla_tuple %s5, %s6
  %s8 = sld [smem:[#allocation0]]
  $region114: #{hierarchical_malware_gnn_forward.4} parent=0
    _
  %s10 = ssub.s32 1, %s8
  %s11 = scalar_select 0, %s10, %s8
  $region1: #{hierarchical_malware_gnn_forward.4} parent=0
    #allocation3 [shape = 'u8[65536]{0}', space=vmem, size = 0x10000, scoped, tag = 'input window, operand 0']
    loop: start=0, step=1, limit=6
    $region2: #{hierarchical_malware_gnn_forward.4} parent=1 // loop_pre_header
      _
    $region3: #{hierarchical_malware_gnn_forward.4} parent=1 // loop_header
      %s13 = sphi 0, %s17
      %p14 = scmp.ge.s32.totalorder %s13, 6
      %s20 = sphi 0, %s32
      %s21 = sphi 0, %s28
      %s22 = sphi 0, %s20
      %s23 = sphi 0, %s21
      %s24 = sphi 0, %s22
      %s25 = sphi 0, %s23
      %s37 = sphi 0, %s39
      %s40 = sphi 0, %s37
      %s41 = sphi 0, %s40
      %s57 = sphi 0, %s41
      %s61 = sphi 0, %s61
      %s63 = sphi 0, %s61
      %s64 = sphi 0, %s63
      %s78 = sphi 0, %s64
      %s84 = sphi 0, %s86
      %s87 = sphi 0, %s84
      %s88 = sphi 0, %s87
      %s104 = sphi 0, %s88
      %s110 = sphi 0, %s112
      %s113 = sphi 0, %s110
      %s114 = sphi 0, %s113
      %s130 = sphi 0, %s114
      %s134 = sphi 0, %s134
      %s136 = sphi 0, %s134
      %s137 = sphi 0, %s136
      %s151 = sphi 0, %s137
      %s157 = sphi 0, %s159
      %s160 = sphi 0, %s157
      %s161 = sphi 0, %s160
      %s177 = sphi 0, %s161
      %s181 = sphi 0, %s181
      %s183 = sphi 0, %s181
      %s184 = sphi 0, %s183
      %s198 = sphi 0, %s184
    $region4: #{hierarchical_malware_gnn_forward.4} parent=1 // loop_header_branch
      %16 = sbr.rel (%p14) target = $region8
    $region5: #{hierarchical_malware_gnn_forward.4} parent=1 // loop_body
      %s18 = ssub.s32 %s13, 1
      %s19 = ssub.s32 %s13, 2
      %s26 = sadd.s32 1, %s21
      %p27 = scmp.ge.s32.totalorder %s26, 2
      %s28 = scalar_select %p27, 0, %s26
      %s29 = sadd.s32 1, %s20
      %s30 = scalar_select %p27, %s29, %s20
      %p31 = scmp.ge.s32.totalorder %s30, 2
      %s32 = scalar_select %p31, 0, %s30
      %s33 = ssub.s32 %s20, %s32
      %s34 = ssub.s32 %s21, %s28
      %s35 = sor.u32 %s33, %s34
      %p36 = scmp.eq.s32.totalorder %s35, 0
      %s38 = sadd.s32 %s37, 1
      %s39 = scalar_select %p36, %s37, %s38
      %p42 = pneg %p36
      %p43 = scmp.eq.s32.totalorder %s13, 3
      %p44 = por %p42, %p43
      %p45 = scmp.ne.s32.totalorder %s37, %s40
      %p46 = scmp.eq.s32.totalorder %s13, 0
      %p47 = por %p45, %p46
      %p48 = scmp.ne.s32.totalorder %s37, %s40
      %p49 = scmp.eq.s32.totalorder %s18, 3
      %p50 = por %p48, %p49
      %p51 = scmp.ne.s32.totalorder %s40, %s41
      %p52 = scmp.eq.s32.totalorder %s18, 0
      %p53 = por %p51, %p52
      %p54 = scmp.ne.s32.totalorder %s40, %s41
      %p55 = scmp.eq.s32.totalorder %s19, 3
      %p56 = por %p54, %p55
      %p58 = scmp.ne.s32.totalorder %s41, %s57
      %p59 = scmp.eq.s32.totalorder %s19, 0
      %p60 = por %p58, %p59
      %s62 = sadd.s32 %s61, 1
      %p65 = scmp.eq.s32.totalorder %s13, 3
      %p66 = scmp.ne.s32.totalorder %s61, %s63
      %p67 = scmp.eq.s32.totalorder %s13, 0
      %p68 = por %p66, %p67
      %p69 = scmp.ne.s32.totalorder %s61, %s63
      %p70 = scmp.eq.s32.totalorder %s18, 3
      %p71 = por %p69, %p70
      %p72 = scmp.ne.s32.totalorder %s63, %s64
      %p73 = scmp.eq.s32.totalorder %s18, 0
      %p74 = por %p72, %p73
      %p75 = scmp.ne.s32.totalorder %s63, %s64
      %p76 = scmp.eq.s32.totalorder %s19, 3
      %p77 = por %p75, %p76
      %p79 = scmp.ne.s32.totalorder %s64, %s78
      %p80 = scmp.eq.s32.totalorder %s19, 0
      %p81 = por %p79, %p80
      %s82 = ssub.s32 %s20, %s32
      %p83 = scmp.eq.s32.totalorder %s82, 0
      %s85 = sadd.s32 %s84, 1
      %s86 = scalar_select %p83, %s84, %s85
      %p89 = pneg %p83
      %p90 = scmp.eq.s32.totalorder %s13, 3
      %p91 = por %p89, %p90
      %p92 = scmp.ne.s32.totalorder %s84, %s87
      %p93 = scmp.eq.s32.totalorder %s13, 0
      %p94 = por %p92, %p93
      %p95 = scmp.ne.s32.totalorder %s84, %s87
      %p96 = scmp.eq.s32.totalorder %s18, 3
      %p97 = por %p95, %p96
      %p98 = scmp.ne.s32.totalorder %s87, %s88
      %p99 = scmp.eq.s32.totalorder %s18, 0
      %p100 = por %p98, %p99
      %p101 = scmp.ne.s32.totalorder %s87, %s88
      %p102 = scmp.eq.s32.totalorder %s19, 3
      %p103 = por %p101, %p102
      %p105 = scmp.ne.s32.totalorder %s88, %s104
      %p106 = scmp.eq.s32.totalorder %s19, 0
      %p107 = por %p105, %p106
      %s108 = ssub.s32 %s20, %s32
      %p109 = scmp.eq.s32.totalorder %s108, 0
      %s111 = sadd.s32 %s110, 1
      %s112 = scalar_select %p109, %s110, %s111
      %p115 = pneg %p109
      %p116 = scmp.eq.s32.totalorder %s13, 3
      %p117 = por %p115, %p116
      %p118 = scmp.ne.s32.totalorder %s110, %s113
      %p119 = scmp.eq.s32.totalorder %s13, 0
      %p120 = por %p118, %p119
      %p121 = scmp.ne.s32.totalorder %s110, %s113
      %p122 = scmp.eq.s32.totalorder %s18, 3
      %p123 = por %p121, %p122
      %p124 = scmp.ne.s32.totalorder %s113, %s114
      %p125 = scmp.eq.s32.totalorder %s18, 0
      %p126 = por %p124, %p125
      %p127 = scmp.ne.s32.totalorder %s113, %s114
      %p128 = scmp.eq.s32.totalorder %s19, 3
      %p129 = por %p127, %p128
      %p131 = scmp.ne.s32.totalorder %s114, %s130
      %p132 = scmp.eq.s32.totalorder %s19, 0
      %p133 = por %p131, %p132
      %s135 = sadd.s32 %s134, 1
      %p138 = scmp.eq.s32.totalorder %s13, 3
      %p139 = scmp.ne.s32.totalorder %s134, %s136
      %p140 = scmp.eq.s32.totalorder %s13, 0
      %p141 = por %p139, %p140
      %p142 = scmp.ne.s32.totalorder %s134, %s136
      %p143 = scmp.eq.s32.totalorder %s18, 3
      %p144 = por %p142, %p143
      %p145 = scmp.ne.s32.totalorder %s136, %s137
      %p146 = scmp.eq.s32.totalorder %s18, 0
      %p147 = por %p145, %p146
      %p148 = scmp.ne.s32.totalorder %s136, %s137
      %p149 = scmp.eq.s32.totalorder %s19, 3
      %p150 = por %p148, %p149
      %p152 = scmp.ne.s32.totalorder %s137, %s151
      %p153 = scmp.eq.s32.totalorder %s19, 0
      %p154 = por %p152, %p153
      %s155 = ssub.s32 %s20, %s32
      %p156 = scmp.eq.s32.totalorder %s155, 0
      %s158 = sadd.s32 %s157, 1
      %s159 = scalar_select %p156, %s157, %s158
      %p162 = pneg %p156
      %p163 = scmp.eq.s32.totalorder %s13, 3
      %p164 = por %p162, %p163
      %p165 = scmp.ne.s32.totalorder %s157, %s160
      %p166 = scmp.eq.s32.totalorder %s13, 0
      %p167 = por %p165, %p166
      %p168 = scmp.ne.s32.totalorder %s157, %s160
      %p169 = scmp.eq.s32.totalorder %s18, 3
      %p170 = por %p168, %p169
      %p171 = scmp.ne.s32.totalorder %s160, %s161
      %p172 = scmp.eq.s32.totalorder %s18, 0
      %p173 = por %p171, %p172
      %p174 = scmp.ne.s32.totalorder %s160, %s161
      %p175 = scmp.eq.s32.totalorder %s19, 3
      %p176 = por %p174, %p175
      %p178 = scmp.ne.s32.totalorder %s161, %s177
      %p179 = scmp.eq.s32.totalorder %s19, 0
      %p180 = por %p178, %p179
      %s182 = sadd.s32 %s181, 1
      %p185 = scmp.eq.s32.totalorder %s13, 3
      %p186 = scmp.ne.s32.totalorder %s181, %s183
      %p187 = scmp.eq.s32.totalorder %s13, 0
      %p188 = por %p186, %p187
      %p189 = scmp.ne.s32.totalorder %s181, %s183
      %p190 = scmp.eq.s32.totalorder %s18, 3
      %p191 = por %p189, %p190
      %p192 = scmp.ne.s32.totalorder %s183, %s184
      %p193 = scmp.eq.s32.totalorder %s18, 0
      %p194 = por %p192, %p193
      %p195 = scmp.ne.s32.totalorder %s183, %s184
      %p196 = scmp.eq.s32.totalorder %s19, 3
      %p197 = por %p195, %p196
      %p199 = scmp.ne.s32.totalorder %s184, %s198
      %p200 = scmp.eq.s32.totalorder %s19, 0
      %p201 = por %p199, %p200
      %p202 = scmp.le.s32.totalorder 1, %s13
      %p203 = scmp.lt.s32.totalorder %s13, 5
      %p204 = pnand %p202, %p203
      %p205 = pneg %p204
      // Predicated region
      $region9: #{hierarchical_malware_gnn_forward.4} parent=5 // pred_check
        _
      $region10: #{hierarchical_malware_gnn_forward.4} parent=5 // pred_check_branch
        %207 = sbr.rel (%p204) target = $region12
      $region11: #{hierarchical_malware_gnn_forward.4} parent=5 // pred_region
        %s208 = ssub.s32 %s13, 1
        // Predicated region
        $region13: #{hierarchical_malware_gnn_forward.4} parent=11 // pred_check
          %p209 = pneg %p74
        $region14: #{hierarchical_malware_gnn_forward.4} parent=11 // pred_check_branch
          %211 = sbr.rel (%p209) target = $region16
        $region15: #{hierarchical_malware_gnn_forward.4} parent=11 // pred_region
          _
        $region16: #{hierarchical_malware_gnn_forward.4} parent=11 // pred_fallthru
          _
        // Predicated region
        $region17: #{hierarchical_malware_gnn_forward.4} parent=11 // pred_check
          %p212 = pneg %p147
        $region18: #{hierarchical_malware_gnn_forward.4} parent=11 // pred_check_branch
          %214 = sbr.rel (%p212) target = $region20
        $region19: #{hierarchical_malware_gnn_forward.4} parent=11 // pred_region
          _
        $region20: #{hierarchical_malware_gnn_forward.4} parent=11 // pred_fallthru
          _
      $region12: #{hierarchical_malware_gnn_forward.4} parent=5 // pred_fallthru
        _
      %p215 = scmp.lt.s32.totalorder %s13, 4
      // Predicated region
      $region21: #{hierarchical_malware_gnn_forward.4} parent=5 // pred_check
        %p216 = pneg %p215
      $region22: #{hierarchical_malware_gnn_forward.4} parent=5 // pred_check_branch
        %218 = sbr.rel (%p216) target = $region24
      $region23: #{hierarchical_malware_gnn_forward.4} parent=5 // pred_region
        // Predicated region
        $region25: #{hierarchical_malware_gnn_forward.4} parent=23 // pred_check
          %p219 = pneg %p47
        $region26: #{hierarchical_malware_gnn_forward.4} parent=23 // pred_check_branch
          %221 = sbr.rel (%p219) target = $region28
        $region27: #{hierarchical_malware_gnn_forward.4} parent=23 // pred_region
          %s222 = sand.u32 %s37, 1
          %s223 = sand.u32 %s37, 1
          %s224 = smul.addr %s223, 64
          %s225 = scalar_lea.vmem [#allocation3], %s224
          %s226 = smul.u32 16, %s20
          %s227 = smul.addr %s226, 2
          %s228 = sadd.s32 %s21, %s227
          %s229 = smul.addr %s228, 4
          %s230 = scalar_lea.vmem %s0, %s229
          // Predicated region
          $region29: #{hierarchical_malware_gnn_forward.4} parent=27 // pred_check
            _
          $region30: #{hierarchical_malware_gnn_forward.4} parent=27 // pred_check_branch
            %232 = sbr.rel (0) target = $region32
          $region31: #{hierarchical_malware_gnn_forward.4} parent=27 // pred_region
            // Predicated region
            $region33: #{hierarchical_malware_gnn_forward.4} parent=31 // pred_check
              _
            $region34: #{hierarchical_malware_gnn_forward.4} parent=31 // pred_check_branch
              %234 = sbr.rel target = $region36
            $region35: #{hierarchical_malware_gnn_forward.4} parent=31 // pred_region
              // Predicated region
              $region48: #{hierarchical_malware_gnn_forward.4} parent=35 // pred_check
                _
              $region49: #{hierarchical_malware_gnn_forward.4} parent=35 // pred_check_branch
                %280 = sbr.rel (0) target = $region51
              $region50: #{hierarchical_malware_gnn_forward.4} parent=35 // pred_region
                loop: start=0, step=1, limit=1
                $region52: #{hierarchical_malware_gnn_forward.4} parent=50 // loop_pre_header
                  _
                $region53: #{hierarchical_malware_gnn_forward.4} parent=50 // loop_header
                  %s282 = sphi 0, %s286
                  %p283 = scmp.ge.s32.totalorder %s282, 1
                  %s287 = sphi %s230, %s230
                  %s288 = sphi %s225, %s225
                $region54: #{hierarchical_malware_gnn_forward.4} parent=50 // loop_header_branch
                  %285 = sbr.rel (%p283) target = $region58
                $region55: #{hierarchical_malware_gnn_forward.4} parent=50 // loop_body
                  _
                $region56: #{hierarchical_malware_gnn_forward.4} parent=50 // loop_footer
                  %s286 = sadd.s32 1, %s282
                $region57: #{hierarchical_malware_gnn_forward.4} parent=50 // loop_footer_branch
                  %281 = sbr.rel target = $region53
                $region58: #{hierarchical_malware_gnn_forward.4} parent=50 // loop_exit
                  _
                %s290 = ssub.s32 16, 1
                loop: start=0, step=1, limit=1
                $region59: #{hierarchical_malware_gnn_forward.4} parent=50 // loop_pre_header
                  _
                $region60: #{hierarchical_malware_gnn_forward.4} parent=50 // loop_header
                  %s292 = sphi 0, %s296
                  %p293 = scmp.ge.s32.totalorder %s292, 1
                  %s297 = sphi %s230, %s230
                  %s298 = sphi %s225, %s225
                $region61: #{hierarchical_malware_gnn_forward.4} parent=50 // loop_header_branch
                  %295 = sbr.rel (%p293) target = $region65
                $region62: #{hierarchical_malware_gnn_forward.4} parent=50 // loop_body
                  %v299 = vld [vmem:[%s297] sm:%s290]
                  %300 = vst [vmem:[%s298] sm:%s290] %v299
                  %v301 = vld [vmem:[%s297 + $0x8] sm:%s290]
                  %302 = vst [vmem:[%s298 + $0x4] sm:%s290] %v301
                  %v303 = vld [vmem:[%s297 + $0x10] sm:%s290]
                  %304 = vst [vmem:[%s298 + $0x8] sm:%s290] %v303
                  %v305 = vld [vmem:[%s297 + $0x18] sm:%s290]
                  %306 = vst [vmem:[%s298 + $0xc] sm:%s290] %v305
                  %v307 = vld [vmem:[%s297 + $0x20] sm:%s290]
                  %308 = vst [vmem:[%s298 + $0x10] sm:%s290] %v307
                  %v309 = vld [vmem:[%s297 + $0x28] sm:%s290]
                  %310 = vst [vmem:[%s298 + $0x14] sm:%s290] %v309
                  %v311 = vld [vmem:[%s297 + $0x30] sm:%s290]
                  %312 = vst [vmem:[%s298 + $0x18] sm:%s290] %v311
                  %v313 = vld [vmem:[%s297 + $0x38] sm:%s290]
                  %314 = vst [vmem:[%s298 + $0x1c] sm:%s290] %v313
                  %v315 = vld [vmem:[%s297 + $0x40] sm:%s290]
                  %316 = vst [vmem:[%s298 + $0x20] sm:%s290] %v315
                  %v317 = vld [vmem:[%s297 + $0x48] sm:%s290]
                  %318 = vst [vmem:[%s298 + $0x24] sm:%s290] %v317
                  %v319 = vld [vmem:[%s297 + $0x50] sm:%s290]
                  %320 = vst [vmem:[%s298 + $0x28] sm:%s290] %v319
                  %v321 = vld [vmem:[%s297 + $0x58] sm:%s290]
                  %322 = vst [vmem:[%s298 + $0x2c] sm:%s290] %v321
                  %v323 = vld [vmem:[%s297 + $0x60] sm:%s290]
                  %324 = vst [vmem:[%s298 + $0x30] sm:%s290] %v323
                  %v325 = vld [vmem:[%s297 + $0x68] sm:%s290]
                  %326 = vst [vmem:[%s298 + $0x34] sm:%s290] %v325
                  %v327 = vld [vmem:[%s297 + $0x70] sm:%s290]
                  %328 = vst [vmem:[%s298 + $0x38] sm:%s290] %v327
                  %v329 = vld [vmem:[%s297 + $0x78] sm:%s290]
                  %330 = vst [vmem:[%s298 + $0x3c] sm:%s290] %v329
                $region63: #{hierarchical_malware_gnn_forward.4} parent=50 // loop_footer
                  %s296 = sadd.s32 1, %s292
                $region64: #{hierarchical_malware_gnn_forward.4} parent=50 // loop_footer_branch
                  %291 = sbr.rel target = $region60
                $region65: #{hierarchical_malware_gnn_forward.4} parent=50 // loop_exit
                  _
              $region51: #{hierarchical_malware_gnn_forward.4} parent=35 // pred_fallthru
                _
            $region36: #{hierarchical_malware_gnn_forward.4} parent=31 // pred_fallthru
              _
            // Predicated region
            $region37: #{hierarchical_malware_gnn_forward.4} parent=31 // pred_check
              _
            $region38: #{hierarchical_malware_gnn_forward.4} parent=31 // pred_check_branch
              %236 = sbr.rel (0) target = $region40
            $region39: #{hierarchical_malware_gnn_forward.4} parent=31 // pred_region
              %s238 = ssub.s32 16, 1
              loop: start=0, step=1, limit=1
              $region41: #{hierarchical_malware_gnn_forward.4} parent=39 // loop_pre_header
                _
              $region42: #{hierarchical_malware_gnn_forward.4} parent=39 // loop_header
                %s240 = sphi 0, %s244
                %p241 = scmp.ge.s32.totalorder %s240, 1
                %s245 = sphi %s230, %s230
                %s246 = sphi %s225, %s225
              $region43: #{hierarchical_malware_gnn_forward.4} parent=39 // loop_header_branch
                %243 = sbr.rel (%p241) target = $region47
              $region44: #{hierarchical_malware_gnn_forward.4} parent=39 // loop_body
                %v247 = vld [vmem:[%s245] sm:%s238]
                %248 = vst [vmem:[%s246] sm:%s238] %v247
                %v249 = vld [vmem:[%s245 + $0x8] sm:%s238]
                %250 = vst [vmem:[%s246 + $0x4] sm:%s238] %v249
                %v251 = vld [vmem:[%s245 + $0x10] sm:%s238]
                %252 = vst [vmem:[%s246 + $0x8] sm:%s238] %v251
                %v253 = vld [vmem:[%s245 + $0x18] sm:%s238]
                %254 = vst [vmem:[%s246 + $0xc] sm:%s238] %v253
                %v255 = vld [vmem:[%s245 + $0x20] sm:%s238]
                %256 = vst [vmem:[%s246 + $0x10] sm:%s238] %v255
                %v257 = vld [vmem:[%s245 + $0x28] sm:%s238]
                %258 = vst [vmem:[%s246 + $0x14] sm:%s238] %v257
                %v259 = vld [vmem:[%s245 + $0x30] sm:%s238]
                %260 = vst [vmem:[%s246 + $0x18] sm:%s238] %v259
                %v261 = vld [vmem:[%s245 + $0x38] sm:%s238]
                %262 = vst [vmem:[%s246 + $0x1c] sm:%s238] %v261
                %v263 = vld [vmem:[%s245 + $0x40] sm:%s238]
                %264 = vst [vmem:[%s246 + $0x20] sm:%s238] %v263
                %v265 = vld [vmem:[%s245 + $0x48] sm:%s238]
                %266 = vst [vmem:[%s246 + $0x24] sm:%s238] %v265
                %v267 = vld [vmem:[%s245 + $0x50] sm:%s238]
                %268 = vst [vmem:[%s246 + $0x28] sm:%s238] %v267
                %v269 = vld [vmem:[%s245 + $0x58] sm:%s238]
                %270 = vst [vmem:[%s246 + $0x2c] sm:%s238] %v269
                %v271 = vld [vmem:[%s245 + $0x60] sm:%s238]
                %272 = vst [vmem:[%s246 + $0x30] sm:%s238] %v271
                %v273 = vld [vmem:[%s245 + $0x68] sm:%s238]
                %274 = vst [vmem:[%s246 + $0x34] sm:%s238] %v273
                %v275 = vld [vmem:[%s245 + $0x70] sm:%s238]
                %276 = vst [vmem:[%s246 + $0x38] sm:%s238] %v275
                %v277 = vld [vmem:[%s245 + $0x78] sm:%s238]
                %278 = vst [vmem:[%s246 + $0x3c] sm:%s238] %v277
              $region45: #{hierarchical_malware_gnn_forward.4} parent=39 // loop_footer
                %s244 = sadd.s32 1, %s240
              $region46: #{hierarchical_malware_gnn_forward.4} parent=39 // loop_footer_branch
                %239 = sbr.rel target = $region42
              $region47: #{hierarchical_malware_gnn_forward.4} parent=39 // loop_exit
                _
            $region40: #{hierarchical_malware_gnn_forward.4} parent=31 // pred_fallthru
              _
          $region32: #{hierarchical_malware_gnn_forward.4} parent=27 // pred_fallthru
            _
          %331 = vnop
        $region28: #{hierarchical_malware_gnn_forward.4} parent=23 // pred_fallthru
          _
        // Predicated region
        $region66: #{hierarchical_malware_gnn_forward.4} parent=23 // pred_check
          %p332 = pneg %p94
        $region67: #{hierarchical_malware_gnn_forward.4} parent=23 // pred_check_branch
          %334 = sbr.rel (%p332) target = $region69
        $region68: #{hierarchical_malware_gnn_forward.4} parent=23 // pred_region
          %p335 = scmp.lt.s32.totalorder %s20, 1
          %s336 = scalar_select %p335, %s20, 1
          %s337 = smul.addr %s336, 4
          %s338 = scalar_lea.vmem %s2, %s337
        $region69: #{hierarchical_malware_gnn_forward.4} parent=23 // pred_fallthru
          _
        // Predicated region
        $region70: #{hierarchical_malware_gnn_forward.4} parent=23 // pred_check
          %p339 = pneg %p120
        $region71: #{hierarchical_malware_gnn_forward.4} parent=23 // pred_check_branch
          %341 = sbr.rel (%p339) target = $region73
        $region72: #{hierarchical_malware_gnn_forward.4} parent=23 // pred_region
          %s342 = smul.u32 16, %s20
          %p343 = scmp.lt.s32.totalorder %s342, 31
          %s344 = scalar_select %p343, %s342, 31
          %s345 = smul.addr %s344, 8
          %s346 = scalar_lea.vmem %s3, %s345
          %s347 = smul.u32 16, %s20
        $region73: #{hierarchical_malware_gnn_forward.4} parent=23 // pred_fallthru
          _
      $region24: #{hierarchical_malware_gnn_forward.4} parent=5 // pred_fallthru
        _
      %p348 = scmp.le.s32.totalorder 1, %s13
      %p349 = scmp.lt.s32.totalorder %s13, 5
      %p350 = pnand %p348, %p349
      %p351 = pneg %p350
      // Predicated region
      $region74: #{hierarchical_malware_gnn_forward.4} parent=5 // pred_check
        _
      $region75: #{hierarchical_malware_gnn_forward.4} parent=5 // pred_check_branch
        %353 = sbr.rel (%p350) target = $region77
      $region76: #{hierarchical_malware_gnn_forward.4} parent=5 // pred_region
        %s354 = ssub.s32 %s13, 1
        %s355 = sand.u32 %s40, 1
        %s356 = sand.u32 %s40, 1
        %s357 = smul.addr %s356, 64
        %s358 = scalar_lea.vmem [#allocation3], %s357
        // Predicated region
        $region78: #{hierarchical_malware_gnn_forward.4} parent=76 // pred_check
          %p359 = pneg %p53
        $region79: #{hierarchical_malware_gnn_forward.4} parent=76 // pred_check_branch
          %361 = sbr.rel (%p359) target = $region81
        $region80: #{hierarchical_malware_gnn_forward.4} parent=76 // pred_region
          _
        $region81: #{hierarchical_malware_gnn_forward.4} parent=76 // pred_fallthru
          _
        %s362 = sand.u32 %s40, 1
        %s363 = sand.u32 %s40, 1
        %s364 = smul.addr %s363, 64
        %s365 = scalar_lea.vmem [#allocation3], %s364
        %p366 = pneg %p53
        %p367 = pneg %p50
        %p368 = pneg %p74
        %p369 = pneg %p71
        %p370 = scmp.lt.s32.totalorder %s22, 1
        %s371 = scalar_select %p370, %s22, 1
        %s372 = smul.addr %s371, 4
        %s373 = scalar_lea.vmem %s2, %s372
        %p374 = pneg %p100
        %p375 = pneg %p97
        %s376 = smul.u32 16, %s22
        %p377 = scmp.lt.s32.totalorder %s376, 31
        %s378 = scalar_select %p377, %s376, 31
        %s379 = smul.addr %s378, 8
        %s380 = scalar_lea.vmem %s3, %s379
        %p381 = pneg %p126
        %p382 = pneg %p123
        %p383 = pneg %p147
        %p384 = pneg %p144
        %p385 = pneg %p173
        %p386 = pneg %p170
        %s387 = smul.u32 16, %s22
        %p388 = scmp.lt.s32.totalorder %s387, 31
        %s389 = scalar_select %p388, %s387, 31
        %s390 = smul.addr %s389, 4
        %s391 = scalar_lea.vmem %s5, %s390
        %p392 = pneg %p194
        %p393 = pneg %p191
        %s394 = smul.u32 16, %s22
        %p395 = scmp.lt.s32.totalorder %s22, 1
        %s396 = scalar_select %p395, %s22, 1
        %s397 = smul.addr %s396, 4
        %s398 = scalar_lea.vmem %s2, %s397
        %s399 = smul.u32 16, %s22
        %p400 = scmp.lt.s32.totalorder %s399, 31
        %s401 = scalar_select %p400, %s399, 31
        %s402 = smul.addr %s401, 8
        %s403 = scalar_lea.vmem %s3, %s402
        %s404 = smul.u32 16, %s22
        %s405 = smul.u32 16, %s22
        %p406 = scmp.lt.s32.totalorder %s405, 31
        %s407 = scalar_select %p406, %s405, 31
        %s408 = smul.addr %s407, 4
        %s409 = scalar_lea.vmem %s5, %s408
        %s410 = smul.u32 16, %s22
        %p412 = scmp.eq.s32.totalorder %s22, 0
        %p413 = scmp.eq.s32.totalorder %s23, 0
        %p414 = pnand %p412, %p413
        %p415 = pneg %p414
        // Predicated region
        $region82: #{hierarchical_malware_gnn_forward.4} parent=76 // pred_check
          _
        $region83: #{hierarchical_malware_gnn_forward.4} parent=76 // pred_check_branch
          %417 = sbr.rel (%p414) target = $region85
        $region84: #{hierarchical_malware_gnn_forward.4} parent=76 // pred_region
          %418 = vst [vmem:[%s6] sm:$0xff] 0.0
          %419 = vst [vmem:[%s6 + $0x8] sm:$0xff] 0.0
        $region85: #{hierarchical_malware_gnn_forward.4} parent=76 // pred_fallthru
          _
        // Predicated region
        $region86: #{hierarchical_malware_gnn_forward.4} parent=76 // pred_check
          %p420 = pneg %p413
        $region87: #{hierarchical_malware_gnn_forward.4} parent=76 // pred_check_branch
          %422 = sbr.rel (%p420) target = $region89
        $region88: #{hierarchical_malware_gnn_forward.4} parent=76 // pred_region
          %423 = vst [vmem:[#allocation2] sm:$0xff] 0.0
          %424 = vst [vmem:[#allocation2 + $0x8] sm:$0xff] 0.0
          %425 = vst [vmem:[#allocation2 + $0x10] sm:$0xff] 0.0
          %426 = vst [vmem:[#allocation2 + $0x18] sm:$0xff] 0.0
          %427 = vst [vmem:[#allocation2 + $0x20] sm:$0xff] 0.0
          %428 = vst [vmem:[#allocation2 + $0x28] sm:$0xff] 0.0
          %429 = vst [vmem:[#allocation2 + $0x30] sm:$0xff] 0.0
          %430 = vst [vmem:[#allocation2 + $0x38] sm:$0xff] 0.0
          %431 = vst [vmem:[#allocation2 + $0x40] sm:$0xff] 0.0
          %432 = vst [vmem:[#allocation2 + $0x48] sm:$0xff] 0.0
          %433 = vst [vmem:[#allocation2 + $0x50] sm:$0xff] 0.0
          %434 = vst [vmem:[#allocation2 + $0x58] sm:$0xff] 0.0
          %435 = vst [vmem:[#allocation2 + $0x60] sm:$0xff] 0.0
          %436 = vst [vmem:[#allocation2 + $0x68] sm:$0xff] 0.0
          %437 = vst [vmem:[#allocation2 + $0x70] sm:$0xff] 0.0
          %438 = vst [vmem:[#allocation2 + $0x78] sm:$0xff] 0.0
        $region89: #{hierarchical_malware_gnn_forward.4} parent=76 // pred_fallthru
          _
        %v439 = vld [vmem:[%s358] sm:$0xf]
        %v440 = vld [vmem:[%s358 + $0x4] sm:$0xf]
        %v441 = vld [vmem:[%s358 + $0x8] sm:$0xf]
        %v442 = vld [vmem:[%s358 + $0xc] sm:$0xf]
        %v443 = vld [vmem:[%s358 + $0x10] sm:$0xf]
        %v444 = vld [vmem:[%s358 + $0x14] sm:$0xf]
        %v445 = vld [vmem:[%s358 + $0x18] sm:$0xf]
        %v446 = vld [vmem:[%s358 + $0x1c] sm:$0xf]
        %v447 = vld [vmem:[%s358 + $0x20] sm:$0xf]
        %v448 = vld [vmem:[%s358 + $0x24] sm:$0xf]
        %v449 = vld [vmem:[%s358 + $0x28] sm:$0xf]
        %v450 = vld [vmem:[%s358 + $0x2c] sm:$0xf]
        %v451 = vld [vmem:[%s358 + $0x30] sm:$0xf]
        %v452 = vld [vmem:[%s358 + $0x34] sm:$0xf]
        %v453 = vld [vmem:[%s358 + $0x38] sm:$0xf]
        %v454 = vld [vmem:[%s358 + $0x3c] sm:$0xf]
        %s455 = smul.u32 %s23, 128
        %s456 = sshra.s32 %s455, 3
        %s457 = sand.u32 %s455, 7
        %s458 = smul.addr %s456, 4
        %s459 = scalar_lea.vmem %s1, %s458
        %v460 = vld [vmem:[%s459] sm:$0xf]
        %v461 = vld [vmem:[%s459 + $0x4] sm:$0xf]
        %v462 = vld [vmem:[%s459 + $0x8] sm:$0xf]
        %v463 = vld [vmem:[%s459 + $0xc] sm:$0xf]
        %v464 = vld [vmem:[%s459 + $0x10] sm:$0xf]
        %v465 = vld [vmem:[%s459 + $0x14] sm:$0xf]
        %v466 = vld [vmem:[%s459 + $0x18] sm:$0xf]
        %v467 = vld [vmem:[%s459 + $0x1c] sm:$0xf]
        %v468 = vld [vmem:[%s459 + $0x20] sm:$0xf]
        %v469 = vld [vmem:[%s459 + $0x24] sm:$0xf]
        %v470 = vld [vmem:[%s459 + $0x28] sm:$0xf]
        %v471 = vld [vmem:[%s459 + $0x2c] sm:$0xf]
        %v472 = vld [vmem:[%s459 + $0x30] sm:$0xf]
        %v473 = vld [vmem:[%s459 + $0x34] sm:$0xf]
        %v474 = vld [vmem:[%s459 + $0x38] sm:$0xf]
        %v475 = vld [vmem:[%s459 + $0x3c] sm:$0xf]
        %v476 = vld [vmem:[#allocation2] sm:$0xff]
        %v477 = vld [vmem:[#allocation2 + $0x8] sm:$0xff]
        %v478 = vld [vmem:[#allocation2 + $0x10] sm:$0xff]
        %v479 = vld [vmem:[#allocation2 + $0x18] sm:$0xff]
        %v480 = vld [vmem:[#allocation2 + $0x20] sm:$0xff]
        %v481 = vld [vmem:[#allocation2 + $0x28] sm:$0xff]
        %v482 = vld [vmem:[#allocation2 + $0x30] sm:$0xff]
        %v483 = vld [vmem:[#allocation2 + $0x38] sm:$0xff]
        %v484 = vld [vmem:[#allocation2 + $0x40] sm:$0xff]
        %v485 = vld [vmem:[#allocation2 + $0x48] sm:$0xff]
        %v486 = vld [vmem:[#allocation2 + $0x50] sm:$0xff]
        %v487 = vld [vmem:[#allocation2 + $0x58] sm:$0xff]
        %v488 = vld [vmem:[#allocation2 + $0x60] sm:$0xff]
        %v489 = vld [vmem:[#allocation2 + $0x68] sm:$0xff]
        %v490 = vld [vmem:[#allocation2 + $0x70] sm:$0xff]
        %v491 = vld [vmem:[#allocation2 + $0x78] sm:$0xff]
        %v508 = vunpack.c.l.b16 %v439
        %v509 = vunpack.c.l.b16 %v440
        %v510 = vunpack.c.l.b16 %v441
        %v511 = vunpack.c.l.b16 %v442
        %v512 = vunpack.c.l.b16 %v443
        %v513 = vunpack.c.l.b16 %v444
        %v514 = vunpack.c.l.b16 %v445
        %v515 = vunpack.c.l.b16 %v446
        %v516 = vunpack.c.l.b16 %v447
        %v517 = vunpack.c.l.b16 %v448
        %v518 = vunpack.c.l.b16 %v449
        %v519 = vunpack.c.l.b16 %v450
        %v520 = vunpack.c.l.b16 %v451
        %v521 = vunpack.c.l.b16 %v452
        %v522 = vunpack.c.l.b16 %v453
        %v523 = vunpack.c.l.b16 %v454
        %v524 = vpack.c.b16 %v509, %v508
        %v525 = vpack.c.b16 %v511, %v510
        %v526 = vpack.c.b16 %v513, %v512
        %v527 = vpack.c.b16 %v515, %v514
        %v528 = vpack.c.b16 %v517, %v516
        %v529 = vpack.c.b16 %v519, %v518
        %v530 = vpack.c.b16 %v521, %v520
        %v531 = vpack.c.b16 %v523, %v522
        %v556 = vunpack.c.l.b16 %v460
        %v557 = vunpack.c.l.b16 %v461
        %v558 = vunpack.c.l.b16 %v462
        %v559 = vunpack.c.l.b16 %v463
        %v560 = vunpack.c.l.b16 %v464
        %v561 = vunpack.c.l.b16 %v465
        %v562 = vunpack.c.l.b16 %v466
        %v563 = vunpack.c.l.b16 %v467
        %v564 = vunpack.c.l.b16 %v468
        %v565 = vunpack.c.l.b16 %v469
        %v566 = vunpack.c.l.b16 %v470
        %v567 = vunpack.c.l.b16 %v471
        %v568 = vunpack.c.l.b16 %v472
        %v569 = vunpack.c.l.b16 %v473
        %v570 = vunpack.c.l.b16 %v474
        %v571 = vunpack.c.l.b16 %v475
        %v572 = vpack.c.b16 %v557, %v556
        %v573 = vpack.c.b16 %v559, %v558
        %v574 = vpack.c.b16 %v561, %v560
        %v575 = vpack.c.b16 %v563, %v562
        %v576 = vpack.c.b16 %v565, %v564
        %v577 = vpack.c.b16 %v567, %v566
        %v578 = vpack.c.b16 %v569, %v568
        %v579 = vpack.c.b16 %v571, %v570
        %588 = vmatprep.subr.bf16.mxu0 0
        %589 = vmatpush1.bf16.msra.mxu0 %v579
        %590 = vmatprep.subr.bf16.mxu0 0
        %591 = vmatpush1.bf16.msra.mxu0 %v578
        %592 = vmatprep.subr.bf16.mxu0 0
        %593 = vmatpush1.bf16.msra.mxu0 %v577
        %594 = vmatprep.subr.bf16.mxu0 0
        %595 = vmatpush1.bf16.msra.mxu0 %v576
        %596 = vmatprep.subr.bf16.mxu0 0
        %597 = vmatpush1.bf16.msra.mxu0 %v575
        %598 = vmatprep.subr.bf16.mxu0 0
        %599 = vmatpush1.bf16.msra.mxu0 %v574
        %600 = vmatprep.subr.bf16.mxu0 0
        %601 = vmatpush1.bf16.msra.mxu0 %v573
        %602 = vmatprep.subr.bf16.mxu0 0
        %603 = vmatpush1.bf16.msra.mxu0 %v572
        %604 = vmatprep.subr.bf16.mxu0 0
        %605 = vmatpush2.bf16.msra.mxu0 0
        %606 = vmatprep.subr.bf16.mxu0 0
        %607 = vmatpush2.bf16.msra.mxu0 0
        %608 = vmatprep.subr.bf16.mxu0 0
        %609 = vmatpush2.bf16.msra.mxu0 0
        %610 = vmatprep.subr.bf16.mxu0 0
        %611 = vmatpush2.bf16.msra.mxu0 0
        %612 = vmatprep.subr.bf16.mxu0 0
        %613 = vmatpush2.bf16.msra.mxu0 0
        %614 = vmatprep.subr.bf16.mxu0 0
        %615 = vmatpush2.bf16.msra.mxu0 0
        %616 = vmatprep.subr.bf16.mxu0 0
        %617 = vmatpush2.bf16.msra.mxu0 0
        %618 = vmatprep.subr.bf16.mxu0 0
        %619 = vmatpush2.bf16.msra.mxu0 0
        %620 = vmatprep.mubr.bf16.mxu0 0
        %621 = vmatmul.mubr.bf16.gmra.mxu0 %v524
        %v622 = vpop.f32.mrf.mxu0
        %v623 = vadd.f32 0.0, %v622
        %v624 = vpop.f32.mrf.mxu0
        %v625 = vpop.f32.mrf.mxu0
        %v626 = vadd.f32 0.0, %v625
        %v627 = vpop.f32.mrf.mxu0
        %628 = vmatprep.mubr.bf16.mxu0 0
        %629 = vmatmul.mubr.bf16.gmra.mxu0 %v525
        %v630 = vpop.f32.mrf.mxu0
        %v631 = vadd.f32 0.0, %v630
        %v632 = vpop.f32.mrf.mxu0
        %v633 = vpop.f32.mrf.mxu0
        %v634 = vadd.f32 0.0, %v633
        %v635 = vpop.f32.mrf.mxu0
        %636 = vmatprep.mubr.bf16.mxu0 0
        %637 = vmatmul.mubr.bf16.gmra.mxu0 %v526
        %v638 = vpop.f32.mrf.mxu0
        %v639 = vadd.f32 0.0, %v638
        %v640 = vpop.f32.mrf.mxu0
        %v641 = vpop.f32.mrf.mxu0
        %v642 = vadd.f32 0.0, %v641
        %v643 = vpop.f32.mrf.mxu0
        %644 = vmatprep.mubr.bf16.mxu0 0
        %645 = vmatmul.mubr.bf16.gmra.mxu0 %v527
        %v646 = vpop.f32.mrf.mxu0
        %v647 = vadd.f32 0.0, %v646
        %v648 = vpop.f32.mrf.mxu0
        %v649 = vpop.f32.mrf.mxu0
        %v650 = vadd.f32 0.0, %v649
        %v651 = vpop.f32.mrf.mxu0
        %652 = vmatprep.mubr.bf16.mxu0 0
        %653 = vmatmul.mubr.bf16.gmra.mxu0 %v528
        %v654 = vpop.f32.mrf.mxu0
        %v655 = vadd.f32 0.0, %v654
        %v656 = vpop.f32.mrf.mxu0
        %v657 = vpop.f32.mrf.mxu0
        %v658 = vadd.f32 0.0, %v657
        %v659 = vpop.f32.mrf.mxu0
        %660 = vmatprep.mubr.bf16.mxu0 0
        %661 = vmatmul.mubr.bf16.gmra.mxu0 %v529
        %v662 = vpop.f32.mrf.mxu0
        %v663 = vadd.f32 0.0, %v662
        %v664 = vpop.f32.mrf.mxu0
        %v665 = vpop.f32.mrf.mxu0
        %v666 = vadd.f32 0.0, %v665
        %v667 = vpop.f32.mrf.mxu0
        %668 = vmatprep.mubr.bf16.mxu0 0
        %669 = vmatmul.mubr.bf16.gmra.mxu0 %v530
        %v670 = vpop.f32.mrf.mxu0
        %v671 = vadd.f32 0.0, %v670
        %v672 = vpop.f32.mrf.mxu0
        %v673 = vpop.f32.mrf.mxu0
        %v674 = vadd.f32 0.0, %v673
        %v675 = vpop.f32.mrf.mxu0
        %676 = vmatprep.mubr.bf16.mxu0 0
        %677 = vmatmul.mubr.bf16.gmra.mxu0 %v531
        %v678 = vpop.f32.mrf.mxu0
        %v679 = vadd.f32 0.0, %v678
        %v680 = vpop.f32.mrf.mxu0
        %v681 = vpop.f32.mrf.mxu0
        %v682 = vadd.f32 0.0, %v681
        %v683 = vpop.f32.mrf.mxu0
        %684 = vdwg.mxu0
        %v685 = vadd.f32 %v476, %v623
        %v686 = vadd.f32 %v477, %v626
        %v687 = vadd.f32 %v478, %v631
        %v688 = vadd.f32 %v479, %v634
        %v689 = vadd.f32 %v480, %v639
        %v690 = vadd.f32 %v481, %v642
        %v691 = vadd.f32 %v482, %v647
        %v692 = vadd.f32 %v483, %v650
        %v693 = vadd.f32 %v484, %v655
        %v694 = vadd.f32 %v485, %v658
        %v695 = vadd.f32 %v486, %v663
        %v696 = vadd.f32 %v487, %v666
        %v697 = vadd.f32 %v488, %v671
        %v698 = vadd.f32 %v489, %v674
        %v699 = vadd.f32 %v490, %v679
        %v700 = vadd.f32 %v491, %v682
        %701 = vst [vmem:[#allocation2] sm:$0xff] %v685
        %702 = vst [vmem:[#allocation2 + $0x8] sm:$0xff] %v686
        %703 = vst [vmem:[#allocation2 + $0x10] sm:$0xff] %v687
        %704 = vst [vmem:[#allocation2 + $0x18] sm:$0xff] %v688
        %705 = vst [vmem:[#allocation2 + $0x20] sm:$0xff] %v689
        %706 = vst [vmem:[#allocation2 + $0x28] sm:$0xff] %v690
        %707 = vst [vmem:[#allocation2 + $0x30] sm:$0xff] %v691
        %708 = vst [vmem:[#allocation2 + $0x38] sm:$0xff] %v692
        %709 = vst [vmem:[#allocation2 + $0x40] sm:$0xff] %v693
        %710 = vst [vmem:[#allocation2 + $0x48] sm:$0xff] %v694
        %711 = vst [vmem:[#allocation2 + $0x50] sm:$0xff] %v695
        %712 = vst [vmem:[#allocation2 + $0x58] sm:$0xff] %v696
        %713 = vst [vmem:[#allocation2 + $0x60] sm:$0xff] %v697
        %714 = vst [vmem:[#allocation2 + $0x68] sm:$0xff] %v698
        %715 = vst [vmem:[#allocation2 + $0x70] sm:$0xff] %v699
        %716 = vst [vmem:[#allocation2 + $0x78] sm:$0xff] %v700
        %s717 = sshra.s32 %s455, 7
        %s718 = sand.u32 %s455, 127
        %s719 = smul.addr %s717, 8
        %s720 = scalar_lea.vmem %s6, %s719
        %v721 = vld [vmem:[%s720] sm:$0xff]
        %v722 = vld [vmem:[%s398] sm:$0xf]
        %723 = vmatprep.subr.bf16.mxu0 0
        %724 = vmatpush1.bf16.msra.mxu0 %v531
        %725 = vmatprep.subr.bf16.mxu0 0
        %726 = vmatpush1.bf16.msra.mxu0 %v530
        %727 = vmatprep.subr.bf16.mxu0 0
        %728 = vmatpush1.bf16.msra.mxu0 %v529
        %729 = vmatprep.subr.bf16.mxu0 0
        %730 = vmatpush1.bf16.msra.mxu0 %v528
        %731 = vmatprep.subr.bf16.mxu0 0
        %732 = vmatpush1.bf16.msra.mxu0 %v527
        %733 = vmatprep.subr.bf16.mxu0 0
        %734 = vmatpush1.bf16.msra.mxu0 %v526
        %735 = vmatprep.subr.bf16.mxu0 0
        %736 = vmatpush1.bf16.msra.mxu0 %v525
        %737 = vmatprep.subr.bf16.mxu0 0
        %738 = vmatpush1.bf16.msra.mxu0 %v524
        %739 = vmatprep.subr.bf16.mxu0 0
        %740 = vmatpush2.bf16.msra.mxu0 0
        %741 = vmatprep.subr.bf16.mxu0 0
        %742 = vmatpush2.bf16.msra.mxu0 0
        %743 = vmatprep.subr.bf16.mxu0 0
        %744 = vmatpush2.bf16.msra.mxu0 0
        %745 = vmatprep.subr.bf16.mxu0 0
        %746 = vmatpush2.bf16.msra.mxu0 0
        %747 = vmatprep.subr.bf16.mxu0 0
        %748 = vmatpush2.bf16.msra.mxu0 0
        %749 = vmatprep.subr.bf16.mxu0 0
        %750 = vmatpush2.bf16.msra.mxu0 0
        %751 = vmatprep.subr.bf16.mxu0 0
        %752 = vmatpush2.bf16.msra.mxu0 0
        %753 = vmatprep.subr.bf16.mxu0 0
        %754 = vmatpush2.bf16.msra.mxu0 0
        %755 = vmatprep.mubr.bf16.mxu0 0
        %756 = vmatmul.mubr.bf16.gmra.mxu0 %v722
        %v757 = vpop.f32.mrf.mxu0
        %v758 = vadd.f32 0.0, %v757
        %v759 = vpop.f32.mrf.mxu0
        %v760 = vpop.f32.mrf.mxu0
        %v761 = vpop.f32.mrf.mxu0
        %762 = vdwg.mxu0
        %v763 = vadd.f32 %v721, %v758
        %764 = vst [vmem:[%s720] sm:$0xff] %v763
        %p765 = scmp.eq.s32.totalorder %s23, 1
        // Predicated region
        $region90: #{hierarchical_malware_gnn_forward.4} parent=76 // pred_check
          %p766 = pneg %p765
        $region91: #{hierarchical_malware_gnn_forward.4} parent=76 // pred_check_branch
          %768 = sbr.rel (%p766) target = $region93
        $region92: #{hierarchical_malware_gnn_forward.4} parent=76 // pred_region
          %v769 = vld [vmem:[%s403] sm:$0xff]
          %v770 = vld [vmem:[%s403 + $0x8] sm:$0xff]
          %v771 = vld [vmem:[%s403 + $0x10] sm:$0xff]
          %v772 = vld [vmem:[%s403 + $0x18] sm:$0xff]
          %v773 = vld [vmem:[%s403 + $0x20] sm:$0xff]
          %v774 = vld [vmem:[%s403 + $0x28] sm:$0xff]
          %v775 = vld [vmem:[%s403 + $0x30] sm:$0xff]
          %v776 = vld [vmem:[%s403 + $0x38] sm:$0xff]
          %v777 = vld [vmem:[%s403 + $0x40] sm:$0xff]
          %v778 = vld [vmem:[%s403 + $0x48] sm:$0xff]
          %v779 = vld [vmem:[%s403 + $0x50] sm:$0xff]
          %v780 = vld [vmem:[%s403 + $0x58] sm:$0xff]
          %v781 = vld [vmem:[%s403 + $0x60] sm:$0xff]
          %v782 = vld [vmem:[%s403 + $0x68] sm:$0xff]
          %v783 = vld [vmem:[%s403 + $0x70] sm:$0xff]
          %v784 = vld [vmem:[%s403 + $0x78] sm:$0xff]
          %v785 = vld [vmem:[#allocation2] sm:$0xff]
          %v786 = vld [vmem:[#allocation2 + $0x8] sm:$0xff]
          %v787 = vld [vmem:[#allocation2 + $0x10] sm:$0xff]
          %v788 = vld [vmem:[#allocation2 + $0x18] sm:$0xff]
          %v789 = vld [vmem:[#allocation2 + $0x20] sm:$0xff]
          %v790 = vld [vmem:[#allocation2 + $0x28] sm:$0xff]
          %v791 = vld [vmem:[#allocation2 + $0x30] sm:$0xff]
          %v792 = vld [vmem:[#allocation2 + $0x38] sm:$0xff]
          %v793 = vld [vmem:[#allocation2 + $0x40] sm:$0xff]
          %v794 = vld [vmem:[#allocation2 + $0x48] sm:$0xff]
          %v795 = vld [vmem:[#allocation2 + $0x50] sm:$0xff]
          %v796 = vld [vmem:[#allocation2 + $0x58] sm:$0xff]
          %v797 = vld [vmem:[#allocation2 + $0x60] sm:$0xff]
          %v798 = vld [vmem:[#allocation2 + $0x68] sm:$0xff]
          %v799 = vld [vmem:[#allocation2 + $0x70] sm:$0xff]
          %v800 = vld [vmem:[#allocation2 + $0x78] sm:$0xff]
          %802 = vset.pattern.permute.xlu0 0
          %803 = vperm.xlu0 %802, %v769
          %v804 = vpop.permute.xlu0 %803
          %807 = vset.pattern.permute.xlu0 0
          %808 = vperm.xlu0 %807, %v770
          %v809 = vpop.permute.xlu0 %808
          %812 = vset.pattern.permute.xlu0 0
          %813 = vperm.xlu0 %812, %v771
          %v814 = vpop.permute.xlu0 %813
          %817 = vset.pattern.permute.xlu0 0
          %818 = vperm.xlu0 %817, %v772
          %v819 = vpop.permute.xlu0 %818
          %822 = vset.pattern.permute.xlu0 0
          %823 = vperm.xlu0 %822, %v773
          %v824 = vpop.permute.xlu0 %823
          %827 = vset.pattern.permute.xlu0 0
          %828 = vperm.xlu0 %827, %v774
          %v829 = vpop.permute.xlu0 %828
          %832 = vset.pattern.permute.xlu0 0
          %833 = vperm.xlu0 %832, %v775
          %v834 = vpop.permute.xlu0 %833
          %837 = vset.pattern.permute.xlu0 0
          %838 = vperm.xlu0 %837, %v776
          %v839 = vpop.permute.xlu0 %838
          %842 = vset.pattern.permute.xlu0 0
          %843 = vperm.xlu0 %842, %v777
          %v844 = vpop.permute.xlu0 %843
          %847 = vset.pattern.permute.xlu0 0
          %848 = vperm.xlu0 %847, %v778
          %v849 = vpop.permute.xlu0 %848
          %852 = vset.pattern.permute.xlu0 0
          %853 = vperm.xlu0 %852, %v779
          %v854 = vpop.permute.xlu0 %853
          %857 = vset.pattern.permute.xlu0 0
          %858 = vperm.xlu0 %857, %v780
          %v859 = vpop.permute.xlu0 %858
          %862 = vset.pattern.permute.xlu0 0
          %863 = vperm.xlu0 %862, %v781
          %v864 = vpop.permute.xlu0 %863
          %867 = vset.pattern.permute.xlu0 0
          %868 = vperm.xlu0 %867, %v782
          %v869 = vpop.permute.xlu0 %868
          %872 = vset.pattern.permute.xlu0 0
          %873 = vperm.xlu0 %872, %v783
          %v874 = vpop.permute.xlu0 %873
          %877 = vset.pattern.permute.xlu0 0
          %878 = vperm.xlu0 %877, %v784
          %v879 = vpop.permute.xlu0 %878
          %v881 = vmul.f32 %v785, %v804
          %v882 = vmul.f32 %v786, %v809
          %v883 = vmul.f32 %v787, %v814
          %v884 = vmul.f32 %v788, %v819
          %v885 = vmul.f32 %v789, %v824
          %v886 = vmul.f32 %v790, %v829
          %v887 = vmul.f32 %v791, %v834
          %v888 = vmul.f32 %v792, %v839
          %v889 = vmul.f32 %v793, %v844
          %v890 = vmul.f32 %v794, %v849
          %v891 = vmul.f32 %v795, %v854
          %v892 = vmul.f32 %v796, %v859
          %v893 = vmul.f32 %v797, %v864
          %v894 = vmul.f32 %v798, %v869
          %v895 = vmul.f32 %v799, %v874
          %v896 = vmul.f32 %v800, %v879
          %v897 = vld [vmem:[%s4] sm:$0x1]
          %v899 = vlaneseq
          %v900 = vshrl.u32 %v899, 7
          %v901 = vsub.s32 0, %v900
          %v902 = vrot.slane %v897, %v901
          %v904 = vadd.f32 %v881, %v902
          %v905 = vadd.f32 %v882, %v902
          %v906 = vadd.f32 %v883, %v902
          %v907 = vadd.f32 %v884, %v902
          %v908 = vadd.f32 %v885, %v902
          %v909 = vadd.f32 %v886, %v902
          %v910 = vadd.f32 %v887, %v902
          %v911 = vadd.f32 %v888, %v902
          %v912 = vadd.f32 %v889, %v902
          %v913 = vadd.f32 %v890, %v902
          %v914 = vadd.f32 %v891, %v902
          %v915 = vadd.f32 %v892, %v902
          %v916 = vadd.f32 %v893, %v902
          %v917 = vadd.f32 %v894, %v902
          %v918 = vadd.f32 %v895, %v902
          %v919 = vadd.f32 %v896, %v902
          %v920 = vmax.f32 %v904, 0.0
          %v921 = vmax.f32 %v905, 0.0
          %v922 = vmax.f32 %v906, 0.0
          %v923 = vmax.f32 %v907, 0.0
          %v924 = vmax.f32 %v908, 0.0
          %v925 = vmax.f32 %v909, 0.0
          %v926 = vmax.f32 %v910, 0.0
          %v927 = vmax.f32 %v911, 0.0
          %v928 = vmax.f32 %v912, 0.0
          %v929 = vmax.f32 %v913, 0.0
          %v930 = vmax.f32 %v914, 0.0
          %v931 = vmax.f32 %v915, 0.0
          %v932 = vmax.f32 %v916, 0.0
          %v933 = vmax.f32 %v917, 0.0
          %v934 = vmax.f32 %v918, 0.0
          %v935 = vmax.f32 %v919, 0.0
          %v936 = vmul.f32 %v920, %v804
          %v937 = vmul.f32 %v921, %v809
          %v938 = vmul.f32 %v922, %v814
          %v939 = vmul.f32 %v923, %v819
          %v940 = vmul.f32 %v924, %v824
          %v941 = vmul.f32 %v925, %v829
          %v942 = vmul.f32 %v926, %v834
          %v943 = vmul.f32 %v927, %v839
          %v944 = vmul.f32 %v928, %v844
          %v945 = vmul.f32 %v929, %v849
          %v946 = vmul.f32 %v930, %v854
          %v947 = vmul.f32 %v931, %v859
          %v948 = vmul.f32 %v932, %v864
          %v949 = vmul.f32 %v933, %v869
          %v950 = vmul.f32 %v934, %v874
          %v951 = vmul.f32 %v935, %v879
          %v952 = vpack.c.bf16 %v937, %v936
          %v953 = vpack.c.bf16 %v939, %v938
          %v954 = vpack.c.bf16 %v941, %v940
          %v955 = vpack.c.bf16 %v943, %v942
          %v956 = vpack.c.bf16 %v945, %v944
          %v957 = vpack.c.bf16 %v947, %v946
          %v958 = vpack.c.bf16 %v949, %v948
          %v959 = vpack.c.bf16 %v951, %v950
          %v968 = vunpack.c.l.b16 %v952
          %v969 = vunpack.c.h.b16 %v952
          %v970 = vunpack.c.l.b16 %v953
          %v971 = vunpack.c.h.b16 %v953
          %v972 = vunpack.c.l.b16 %v954
          %v973 = vunpack.c.h.b16 %v954
          %v974 = vunpack.c.l.b16 %v955
          %v975 = vunpack.c.h.b16 %v955
          %v976 = vunpack.c.l.b16 %v956
          %v977 = vunpack.c.h.b16 %v956
          %v978 = vunpack.c.l.b16 %v957
          %v979 = vunpack.c.h.b16 %v957
          %v980 = vunpack.c.l.b16 %v958
          %v981 = vunpack.c.h.b16 %v958
          %v982 = vunpack.c.l.b16 %v959
          %v983 = vunpack.c.h.b16 %v959
          %v984 = vpack.c.b16 %v968, %v968
          %v985 = vpack.c.b16 %v969, %v969
          %v986 = vpack.c.b16 %v970, %v970
          %v987 = vpack.c.b16 %v971, %v971
          %v988 = vpack.c.b16 %v972, %v972
          %v989 = vpack.c.b16 %v973, %v973
          %v990 = vpack.c.b16 %v974, %v974
          %v991 = vpack.c.b16 %v975, %v975
          %v992 = vpack.c.b16 %v976, %v976
          %v993 = vpack.c.b16 %v977, %v977
          %v994 = vpack.c.b16 %v978, %v978
          %v995 = vpack.c.b16 %v979, %v979
          %v996 = vpack.c.b16 %v980, %v980
          %v997 = vpack.c.b16 %v981, %v981
          %v998 = vpack.c.b16 %v982, %v982
          %v999 = vpack.c.b16 %v983, %v983
          %1016 = vst [vmem:[%s409] sm:$0xf] %v984
          %1017 = vst [vmem:[%s409 + $0x4] sm:$0xf] %v985
          %1018 = vst [vmem:[%s409 + $0x8] sm:$0xf] %v986
          %1019 = vst [vmem:[%s409 + $0xc] sm:$0xf] %v987
          %1020 = vst [vmem:[%s409 + $0x10] sm:$0xf] %v988
          %1021 = vst [vmem:[%s409 + $0x14] sm:$0xf] %v989
          %1022 = vst [vmem:[%s409 + $0x18] sm:$0xf] %v990
          %1023 = vst [vmem:[%s409 + $0x1c] sm:$0xf] %v991
          %1024 = vst [vmem:[%s409 + $0x20] sm:$0xf] %v992
          %1025 = vst [vmem:[%s409 + $0x24] sm:$0xf] %v993
          %1026 = vst [vmem:[%s409 + $0x28] sm:$0xf] %v994
          %1027 = vst [vmem:[%s409 + $0x2c] sm:$0xf] %v995
          %1028 = vst [vmem:[%s409 + $0x30] sm:$0xf] %v996
          %1029 = vst [vmem:[%s409 + $0x34] sm:$0xf] %v997
          %1030 = vst [vmem:[%s409 + $0x38] sm:$0xf] %v998
          %1031 = vst [vmem:[%s409 + $0x3c] sm:$0xf] %v999
        $region93: #{hierarchical_malware_gnn_forward.4} parent=76 // pred_fallthru
          _
        %s1032 = smul.u32 16, %s22
        %p1033 = scmp.lt.s32.totalorder %s1032, 31
        %s1034 = scalar_select %p1033, %s1032, 31
        %s1035 = smul.addr %s1034, 4
        %s1036 = scalar_lea.vmem %s5, %s1035
        // Predicated region
        $region94: #{hierarchical_malware_gnn_forward.4} parent=76 // pred_check
          %p1037 = pneg %p170
        $region95: #{hierarchical_malware_gnn_forward.4} parent=76 // pred_check_branch
          %1039 = sbr.rel (%p1037) target = $region97
        $region96: #{hierarchical_malware_gnn_forward.4} parent=76 // pred_region
          %s1040 = smul.u32 16, %s22
        $region97: #{hierarchical_malware_gnn_forward.4} parent=76 // pred_fallthru
          _
        // Predicated region
        $region98: #{hierarchical_malware_gnn_forward.4} parent=76 // pred_check
          %p1041 = pneg %p191
        $region99: #{hierarchical_malware_gnn_forward.4} parent=76 // pred_check_branch
          %1043 = sbr.rel (%p1041) target = $region101
        $region100: #{hierarchical_malware_gnn_forward.4} parent=76 // pred_region
          _
        $region101: #{hierarchical_malware_gnn_forward.4} parent=76 // pred_fallthru
          _
        // Predicated region
        $region102: #{hierarchical_malware_gnn_forward.4} parent=76 // pred_check
          %p1044 = pneg %p191
        $region103: #{hierarchical_malware_gnn_forward.4} parent=76 // pred_check_branch
          %1046 = sbr.rel (%p1044) target = $region105
        $region104: #{hierarchical_malware_gnn_forward.4} parent=76 // pred_region
          _
        $region105: #{hierarchical_malware_gnn_forward.4} parent=76 // pred_fallthru
          _
      $region77: #{hierarchical_malware_gnn_forward.4} parent=5 // pred_fallthru
        _
      %p1047 = scmp.le.s32.totalorder 2, %s13
      // Predicated region
      $region106: #{hierarchical_malware_gnn_forward.4} parent=5 // pred_check
        %p1048 = pneg %p1047
      $region107: #{hierarchical_malware_gnn_forward.4} parent=5 // pred_check_branch
        %1050 = sbr.rel (%p1048) target = $region109
      $region108: #{hierarchical_malware_gnn_forward.4} parent=5 // pred_region
        %s1051 = ssub.s32 %s13, 2
        // Predicated region
        $region110: #{hierarchical_malware_gnn_forward.4} parent=108 // pred_check
          %p1052 = pneg %p176
        $region111: #{hierarchical_malware_gnn_forward.4} parent=108 // pred_check_branch
          %1054 = sbr.rel (%p1052) target = $region113
        $region112: #{hierarchical_malware_gnn_forward.4} parent=108 // pred_region
          %s1055 = smul.u32 16, %s24
          %p1056 = scmp.lt.s32.totalorder %s1055, 31
          %s1057 = scalar_select %p1056, %s1055, 31
          %s1058 = smul.addr %s1057, 4
          %s1059 = scalar_lea.vmem %s5, %s1058
        $region113: #{hierarchical_malware_gnn_forward.4} parent=108 // pred_fallthru
          _
      $region109: #{hierarchical_malware_gnn_forward.4} parent=5 // pred_fallthru
        _
    $region6: #{hierarchical_malware_gnn_forward.4} parent=1 // loop_footer
      %s17 = sadd.s32 1, %s13
    $region7: #{hierarchical_malware_gnn_forward.4} parent=1 // loop_footer_branch
      %12 = sbr.rel target = $region3
    $region8: #{hierarchical_malware_gnn_forward.4} parent=1 // loop_exit
      _

// kernel: hierarchical_malware_gnn_forward.5
$region0: #{hierarchical_malware_gnn_forward.5}
  #allocation0 [shape = 'u32[]', space=smem, size = 0x4, offset = 0x4, fixed_abs, tag = 'smem constant byte address 0x4 - core index']
  #allocation1 [shape = 'u32[144,128]{1,0:T(1,128)}', space=vmem, size = 0x12000, scoped, tag = 'internal scratch']
  #allocation2 [shape = 'f32[8,128]{1,0:T(8,128)}', space=vmem, size = 0x1000, scoped, tag = 'scratch operand']
  %s0 = inlined_call_operand.vmem [shape: f32[8,256], index: 0, kind: input, shape index: {}]
  %s1 = inlined_call_operand.vmem [shape: bf16[256,128], index: 1, kind: input, shape index: {}]
  %s2 = inlined_call_operand.vmem [shape: bf16[128,256], index: 2, kind: input, shape index: {}]
  %s3 = inlined_call_operand.vmem [shape: f32[1,256], index: 3, kind: input, shape index: {}]
  %s4 = inlined_call_operand.vmem [shape: bf16[256,128], index: 4, kind: input, shape index: {}]
  %s5 = inlined_call_operand.vmem [shape: f32[1,128], index: 5, kind: input, shape index: {}]
  %s6 = inlined_call_operand.vmem [shape: f32[8,256], index: 6, kind: output, shape index: {0}]
  %s7 = inlined_call_operand.vmem [shape: f32[8,128], index: 7, kind: output, shape index: {1}]
  %8 = xla_tuple %s6, %s7
  %s9 = sld [smem:[#allocation0]]
  $region73: #{hierarchical_malware_gnn_forward.5} parent=0
    _
  %s11 = ssub.s32 1, %s9
  %s12 = scalar_select 0, %s11, %s9
  loop: start=0, step=1, limit=4
  $region2: #{hierarchical_malware_gnn_forward.5} parent=0 // loop_pre_header
    _
  $region3: #{hierarchical_malware_gnn_forward.5} parent=0 // loop_header
    %s14 = sphi 0, %s18
    %p15 = scmp.ge.s32.totalorder %s14, 4
    %s22 = sphi 0, %s22
    %s24 = sphi 0, %s22
    %s25 = sphi 0, %s24
    %s39 = sphi 0, %s25
    %s45 = sphi 0, %s47
    %s48 = sphi 0, %s45
    %s49 = sphi 0, %s48
    %s65 = sphi 0, %s49
    %s69 = sphi 0, %s69
    %s71 = sphi 0, %s69
    %s72 = sphi 0, %s71
    %s86 = sphi 0, %s72
    %s90 = sphi 0, %s90
    %s92 = sphi 0, %s90
    %s93 = sphi 0, %s92
    %s107 = sphi 0, %s93
    %s111 = sphi 0, %s111
    %s113 = sphi 0, %s111
    %s114 = sphi 0, %s113
    %s128 = sphi 0, %s114
    %s132 = sphi 0, %s132
    %s134 = sphi 0, %s132
    %s135 = sphi 0, %s134
    %s149 = sphi 0, %s135
    %s153 = sphi 0, %s153
    %s155 = sphi 0, %s153
    %s156 = sphi 0, %s155
    %s170 = sphi 0, %s156
    %s174 = sphi 0, %s174
    %s176 = sphi 0, %s174
    %s177 = sphi 0, %s176
    %s191 = sphi 0, %s177
  $region4: #{hierarchical_malware_gnn_forward.5} parent=0 // loop_header_branch
    %17 = sbr.rel (%p15) target = $region8
  $region5: #{hierarchical_malware_gnn_forward.5} parent=0 // loop_body
    %s19 = ssub.s32 %s14, 1
    %s20 = ssub.s32 %s14, 2
    %s21 = sadd.s32 %s14, 1
    %s23 = sadd.s32 %s22, 1
    %p26 = scmp.eq.s32.totalorder %s14, 1
    %p27 = scmp.ne.s32.totalorder %s22, %s24
    %p28 = scmp.eq.s32.totalorder %s14, 0
    %p29 = por %p27, %p28
    %p30 = scmp.ne.s32.totalorder %s22, %s24
    %p31 = scmp.eq.s32.totalorder %s19, 1
    %p32 = por %p30, %p31
    %p33 = scmp.ne.s32.totalorder %s24, %s25
    %p34 = scmp.eq.s32.totalorder %s19, 0
    %p35 = por %p33, %p34
    %p36 = scmp.ne.s32.totalorder %s24, %s25
    %p37 = scmp.eq.s32.totalorder %s20, 1
    %p38 = por %p36, %p37
    %p40 = scmp.ne.s32.totalorder %s25, %s39
    %p41 = scmp.eq.s32.totalorder %s20, 0
    %p42 = por %p40, %p41
    %s43 = ssub.s32 %s14, %s21
    %p44 = scmp.eq.s32.totalorder %s43, 0
    %s46 = sadd.s32 %s45, 1
    %s47 = scalar_select %p44, %s45, %s46
    %p50 = pneg %p44
    %p51 = scmp.eq.s32.totalorder %s14, 1
    %p52 = por %p50, %p51
    %p53 = scmp.ne.s32.totalorder %s45, %s48
    %p54 = scmp.eq.s32.totalorder %s14, 0
    %p55 = por %p53, %p54
    %p56 = scmp.ne.s32.totalorder %s45, %s48
    %p57 = scmp.eq.s32.totalorder %s19, 1
    %p58 = por %p56, %p57
    %p59 = scmp.ne.s32.totalorder %s48, %s49
    %p60 = scmp.eq.s32.totalorder %s19, 0
    %p61 = por %p59, %p60
    %p62 = scmp.ne.s32.totalorder %s48, %s49
    %p63 = scmp.eq.s32.totalorder %s20, 1
    %p64 = por %p62, %p63
    %p66 = scmp.ne.s32.totalorder %s49, %s65
    %p67 = scmp.eq.s32.totalorder %s20, 0
    %p68 = por %p66, %p67
    %s70 = sadd.s32 %s69, 1
    %p73 = scmp.eq.s32.totalorder %s14, 1
    %p74 = scmp.ne.s32.totalorder %s69, %s71
    %p75 = scmp.eq.s32.totalorder %s14, 0
    %p76 = por %p74, %p75
    %p77 = scmp.ne.s32.totalorder %s69, %s71
    %p78 = scmp.eq.s32.totalorder %s19, 1
    %p79 = por %p77, %p78
    %p80 = scmp.ne.s32.totalorder %s71, %s72
    %p81 = scmp.eq.s32.totalorder %s19, 0
    %p82 = por %p80, %p81
    %p83 = scmp.ne.s32.totalorder %s71, %s72
    %p84 = scmp.eq.s32.totalorder %s20, 1
    %p85 = por %p83, %p84
    %p87 = scmp.ne.s32.totalorder %s72, %s86
    %p88 = scmp.eq.s32.totalorder %s20, 0
    %p89 = por %p87, %p88
    %s91 = sadd.s32 %s90, 1
    %p94 = scmp.eq.s32.totalorder %s14, 1
    %p95 = scmp.ne.s32.totalorder %s90, %s92
    %p96 = scmp.eq.s32.totalorder %s14, 0
    %p97 = por %p95, %p96
    %p98 = scmp.ne.s32.totalorder %s90, %s92
    %p99 = scmp.eq.s32.totalorder %s19, 1
    %p100 = por %p98, %p99
    %p101 = scmp.ne.s32.totalorder %s92, %s93
    %p102 = scmp.eq.s32.totalorder %s19, 0
    %p103 = por %p101, %p102
    %p104 = scmp.ne.s32.totalorder %s92, %s93
    %p105 = scmp.eq.s32.totalorder %s20, 1
    %p106 = por %p104, %p105
    %p108 = scmp.ne.s32.totalorder %s93, %s107
    %p109 = scmp.eq.s32.totalorder %s20, 0
    %p110 = por %p108, %p109
    %s112 = sadd.s32 %s111, 1
    %p115 = scmp.eq.s32.totalorder %s14, 1
    %p116 = scmp.ne.s32.totalorder %s111, %s113
    %p117 = scmp.eq.s32.totalorder %s14, 0
    %p118 = por %p116, %p117
    %p119 = scmp.ne.s32.totalorder %s111, %s113
    %p120 = scmp.eq.s32.totalorder %s19, 1
    %p121 = por %p119, %p120
    %p122 = scmp.ne.s32.totalorder %s113, %s114
    %p123 = scmp.eq.s32.totalorder %s19, 0
    %p124 = por %p122, %p123
    %p125 = scmp.ne.s32.totalorder %s113, %s114
    %p126 = scmp.eq.s32.totalorder %s20, 1
    %p127 = por %p125, %p126
    %p129 = scmp.ne.s32.totalorder %s114, %s128
    %p130 = scmp.eq.s32.totalorder %s20, 0
    %p131 = por %p129, %p130
    %s133 = sadd.s32 %s132, 1
    %p136 = scmp.eq.s32.totalorder %s14, 1
    %p137 = scmp.ne.s32.totalorder %s132, %s134
    %p138 = scmp.eq.s32.totalorder %s14, 0
    %p139 = por %p137, %p138
    %p140 = scmp.ne.s32.totalorder %s132, %s134
    %p141 = scmp.eq.s32.totalorder %s19, 1
    %p142 = por %p140, %p141
    %p143 = scmp.ne.s32.totalorder %s134, %s135
    %p144 = scmp.eq.s32.totalorder %s19, 0
    %p145 = por %p143, %p144
    %p146 = scmp.ne.s32.totalorder %s134, %s135
    %p147 = scmp.eq.s32.totalorder %s20, 1
    %p148 = por %p146, %p147
    %p150 = scmp.ne.s32.totalorder %s135, %s149
    %p151 = scmp.eq.s32.totalorder %s20, 0
    %p152 = por %p150, %p151
    %s154 = sadd.s32 %s153, 1
    %p157 = scmp.eq.s32.totalorder %s14, 1
    %p158 = scmp.ne.s32.totalorder %s153, %s155
    %p159 = scmp.eq.s32.totalorder %s14, 0
    %p160 = por %p158, %p159
    %p161 = scmp.ne.s32.totalorder %s153, %s155
    %p162 = scmp.eq.s32.totalorder %s19, 1
    %p163 = por %p161, %p162
    %p164 = scmp.ne.s32.totalorder %s155, %s156
    %p165 = scmp.eq.s32.totalorder %s19, 0
    %p166 = por %p164, %p165
    %p167 = scmp.ne.s32.totalorder %s155, %s156
    %p168 = scmp.eq.s32.totalorder %s20, 1
    %p169 = por %p167, %p168
    %p171 = scmp.ne.s32.totalorder %s156, %s170
    %p172 = scmp.eq.s32.totalorder %s20, 0
    %p173 = por %p171, %p172
    %s175 = sadd.s32 %s174, 1
    %p178 = scmp.eq.s32.totalorder %s14, 1
    %p179 = scmp.ne.s32.totalorder %s174, %s176
    %p180 = scmp.eq.s32.totalorder %s14, 0
    %p181 = por %p179, %p180
    %p182 = scmp.ne.s32.totalorder %s174, %s176
    %p183 = scmp.eq.s32.totalorder %s19, 1
    %p184 = por %p182, %p183
    %p185 = scmp.ne.s32.totalorder %s176, %s177
    %p186 = scmp.eq.s32.totalorder %s19, 0
    %p187 = por %p185, %p186
    %p188 = scmp.ne.s32.totalorder %s176, %s177
    %p189 = scmp.eq.s32.totalorder %s20, 1
    %p190 = por %p188, %p189
    %p192 = scmp.ne.s32.totalorder %s177, %s191
    %p193 = scmp.eq.s32.totalorder %s20, 0
    %p194 = por %p192, %p193
    %p195 = scmp.le.s32.totalorder 1, %s14
    %p196 = scmp.lt.s32.totalorder %s14, 3
    %p197 = pnand %p195, %p196
    %p198 = pneg %p197
    // Predicated region
    $region9: #{hierarchical_malware_gnn_forward.5} parent=5 // pred_check
      _
    $region10: #{hierarchical_malware_gnn_forward.5} parent=5 // pred_check_branch
      %200 = sbr.rel (%p197) target = $region12
    $region11: #{hierarchical_malware_gnn_forward.5} parent=5 // pred_region
      %s201 = ssub.s32 %s14, 1
      // Predicated region
      $region13: #{hierarchical_malware_gnn_forward.5} parent=11 // pred_check
        %p202 = pneg %p35
      $region14: #{hierarchical_malware_gnn_forward.5} parent=11 // pred_check_branch
        %204 = sbr.rel (%p202) target = $region16
      $region15: #{hierarchical_malware_gnn_forward.5} parent=11 // pred_region
        _
      $region16: #{hierarchical_malware_gnn_forward.5} parent=11 // pred_fallthru
        _
      // Predicated region
      $region17: #{hierarchical_malware_gnn_forward.5} parent=11 // pred_check
        %p205 = pneg %p82
      $region18: #{hierarchical_malware_gnn_forward.5} parent=11 // pred_check_branch
        %207 = sbr.rel (%p205) target = $region20
      $region19: #{hierarchical_malware_gnn_forward.5} parent=11 // pred_region
        _
      $region20: #{hierarchical_malware_gnn_forward.5} parent=11 // pred_fallthru
        _
      // Predicated region
      $region21: #{hierarchical_malware_gnn_forward.5} parent=11 // pred_check
        %p208 = pneg %p103
      $region22: #{hierarchical_malware_gnn_forward.5} parent=11 // pred_check_branch
        %210 = sbr.rel (%p208) target = $region24
      $region23: #{hierarchical_malware_gnn_forward.5} parent=11 // pred_region
        _
      $region24: #{hierarchical_malware_gnn_forward.5} parent=11 // pred_fallthru
        _
      // Predicated region
      $region25: #{hierarchical_malware_gnn_forward.5} parent=11 // pred_check
        %p211 = pneg %p124
      $region26: #{hierarchical_malware_gnn_forward.5} parent=11 // pred_check_branch
        %213 = sbr.rel (%p211) target = $region28
      $region27: #{hierarchical_malware_gnn_forward.5} parent=11 // pred_region
        _
      $region28: #{hierarchical_malware_gnn_forward.5} parent=11 // pred_fallthru
        _
      // Predicated region
      $region29: #{hierarchical_malware_gnn_forward.5} parent=11 // pred_check
        %p214 = pneg %p145
      $region30: #{hierarchical_malware_gnn_forward.5} parent=11 // pred_check_branch
        %216 = sbr.rel (%p214) target = $region32
      $region31: #{hierarchical_malware_gnn_forward.5} parent=11 // pred_region
        _
      $region32: #{hierarchical_malware_gnn_forward.5} parent=11 // pred_fallthru
        _
    $region12: #{hierarchical_malware_gnn_forward.5} parent=5 // pred_fallthru
      _
    %p217 = scmp.lt.s32.totalorder %s14, 2
    // Predicated region
    $region33: #{hierarchical_malware_gnn_forward.5} parent=5 // pred_check
      %p218 = pneg %p217
    $region34: #{hierarchical_malware_gnn_forward.5} parent=5 // pred_check_branch
      %220 = sbr.rel (%p218) target = $region36
    $region35: #{hierarchical_malware_gnn_forward.5} parent=5 // pred_region
      // Predicated region
      $region37: #{hierarchical_malware_gnn_forward.5} parent=35 // pred_check
        %p221 = pneg %p55
      $region38: #{hierarchical_malware_gnn_forward.5} parent=35 // pred_check_branch
        %223 = sbr.rel (%p221) target = $region40
      $region39: #{hierarchical_malware_gnn_forward.5} parent=35 // pred_region
        %s224 = smul.u32 16, %s14
        %p225 = scmp.lt.s32.totalorder %s224, 31
        %s226 = scalar_select %p225, %s224, 31
        %s227 = smul.addr %s226, 4
        %s228 = scalar_lea.vmem %s1, %s227
        %s229 = smul.u32 16, %s14
      $region40: #{hierarchical_malware_gnn_forward.5} parent=35 // pred_fallthru
        _
    $region36: #{hierarchical_malware_gnn_forward.5} parent=5 // pred_fallthru
      _
    %p230 = scmp.le.s32.totalorder 1, %s14
    %p231 = scmp.lt.s32.totalorder %s14, 3
    %p232 = pnand %p230, %p231
    %p233 = pneg %p232
    // Predicated region
    $region41: #{hierarchical_malware_gnn_forward.5} parent=5 // pred_check
      _
    $region42: #{hierarchical_malware_gnn_forward.5} parent=5 // pred_check_branch
      %235 = sbr.rel (%p232) target = $region44
    $region43: #{hierarchical_malware_gnn_forward.5} parent=5 // pred_region
      %s236 = ssub.s32 %s14, 1
      %p237 = pneg %p35
      %p238 = pneg %p32
      %s239 = smul.u32 16, %s19
      %p240 = scmp.lt.s32.totalorder %s239, 31
      %s241 = scalar_select %p240, %s239, 31
      %s242 = smul.addr %s241, 4
      %s243 = scalar_lea.vmem %s1, %s242
      %p244 = pneg %p61
      %p245 = pneg %p58
      %p246 = pneg %p82
      %p247 = pneg %p79
      %p248 = pneg %p103
      %p249 = pneg %p100
      %p250 = pneg %p124
      %p251 = pneg %p121
      %p252 = pneg %p145
      %p253 = pneg %p142
      %p254 = pneg %p166
      %p255 = pneg %p163
      %p256 = pneg %p187
      %p257 = pneg %p184
      %s258 = smul.u32 16, %s19
      %p259 = scmp.lt.s32.totalorder %s258, 31
      %s260 = scalar_select %p259, %s258, 31
      %s261 = smul.addr %s260, 4
      %s262 = scalar_lea.vmem %s1, %s261
      %s263 = smul.u32 16, %s19
      %p265 = scmp.eq.s32.totalorder %s19, 0
      // Predicated region
      $region45: #{hierarchical_malware_gnn_forward.5} parent=43 // pred_check
        %p266 = pneg %p265
      $region46: #{hierarchical_malware_gnn_forward.5} parent=43 // pred_check_branch
        %268 = sbr.rel (%p266) target = $region48
      $region47: #{hierarchical_malware_gnn_forward.5} parent=43 // pred_region
        %269 = vst [vmem:[#allocation2] sm:$0xff] 0.0
      $region48: #{hierarchical_malware_gnn_forward.5} parent=43 // pred_fallthru
        _
      %s270 = smul.u32 %s19, 128
      %s271 = sshra.s32 %s270, 7
      %s272 = sand.u32 %s270, 127
      %s273 = smul.addr %s271, 8
      %s274 = scalar_lea.vmem %s0, %s273
      %v275 = vld [vmem:[%s274] sm:$0xff]
      %v276 = vpack.c.bf16 %v275, %v275
      %v277 = vld [vmem:[#allocation2] sm:$0xff]
      %v278 = vld [vmem:[%s262] sm:$0xf]
      %v279 = vld [vmem:[%s262 + $0x4] sm:$0xf]
      %v280 = vld [vmem:[%s262 + $0x8] sm:$0xf]
      %v281 = vld [vmem:[%s262 + $0xc] sm:$0xf]
      %v282 = vld [vmem:[%s262 + $0x10] sm:$0xf]
      %v283 = vld [vmem:[%s262 + $0x14] sm:$0xf]
      %v284 = vld [vmem:[%s262 + $0x18] sm:$0xf]
      %v285 = vld [vmem:[%s262 + $0x1c] sm:$0xf]
      %v286 = vld [vmem:[%s262 + $0x20] sm:$0xf]
      %v287 = vld [vmem:[%s262 + $0x24] sm:$0xf]
      %v288 = vld [vmem:[%s262 + $0x28] sm:$0xf]
      %v289 = vld [vmem:[%s262 + $0x2c] sm:$0xf]
      %v290 = vld [vmem:[%s262 + $0x30] sm:$0xf]
      %v291 = vld [vmem:[%s262 + $0x34] sm:$0xf]
      %v292 = vld [vmem:[%s262 + $0x38] sm:$0xf]
      %v293 = vld [vmem:[%s262 + $0x3c] sm:$0xf]
      %v310 = vunpack.c.l.b16 %v278
      %v311 = vunpack.c.l.b16 %v279
      %v312 = vunpack.c.l.b16 %v280
      %v313 = vunpack.c.l.b16 %v281
      %v314 = vunpack.c.l.b16 %v282
      %v315 = vunpack.c.l.b16 %v283
      %v316 = vunpack.c.l.b16 %v284
      %v317 = vunpack.c.l.b16 %v285
      %v318 = vunpack.c.l.b16 %v286
      %v319 = vunpack.c.l.b16 %v287
      %v320 = vunpack.c.l.b16 %v288
      %v321 = vunpack.c.l.b16 %v289
      %v322 = vunpack.c.l.b16 %v290
      %v323 = vunpack.c.l.b16 %v291
      %v324 = vunpack.c.l.b16 %v292
      %v325 = vunpack.c.l.b16 %v293
      %v326 = vpack.c.b16 %v311, %v310
      %v327 = vpack.c.b16 %v313, %v312
      %v328 = vpack.c.b16 %v315, %v314
      %v329 = vpack.c.b16 %v317, %v316
      %v330 = vpack.c.b16 %v319, %v318
      %v331 = vpack.c.b16 %v321, %v320
      %v332 = vpack.c.b16 %v323, %v322
      %v333 = vpack.c.b16 %v325, %v324
      %342 = vmatprep.subr.bf16.mxu0 0
      %343 = vmatpush1.bf16.msra.mxu0 %v333
      %344 = vmatprep.subr.bf16.mxu0 0
      %345 = vmatpush1.bf16.msra.mxu0 %v332
      %346 = vmatprep.subr.bf16.mxu0 0
      %347 = vmatpush1.bf16.msra.mxu0 %v331
      %348 = vmatprep.subr.bf16.mxu0 0
      %349 = vmatpush1.bf16.msra.mxu0 %v330
      %350 = vmatprep.subr.bf16.mxu0 0
      %351 = vmatpush1.bf16.msra.mxu0 %v329
      %352 = vmatprep.subr.bf16.mxu0 0
      %353 = vmatpush1.bf16.msra.mxu0 %v328
      %354 = vmatprep.subr.bf16.mxu0 0
      %355 = vmatpush1.bf16.msra.mxu0 %v327
      %356 = vmatprep.subr.bf16.mxu0 0
      %357 = vmatpush1.bf16.msra.mxu0 %v326
      %358 = vmatprep.subr.bf16.mxu0 0
      %359 = vmatpush2.bf16.msra.mxu0 0
      %360 = vmatprep.subr.bf16.mxu0 0
      %361 = vmatpush2.bf16.msra.mxu0 0
      %362 = vmatprep.subr.bf16.mxu0 0
      %363 = vmatpush2.bf16.msra.mxu0 0
      %364 = vmatprep.subr.bf16.mxu0 0
      %365 = vmatpush2.bf16.msra.mxu0 0
      %366 = vmatprep.subr.bf16.mxu0 0
      %367 = vmatpush2.bf16.msra.mxu0 0
      %368 = vmatprep.subr.bf16.mxu0 0
      %369 = vmatpush2.bf16.msra.mxu0 0
      %370 = vmatprep.subr.bf16.mxu0 0
      %371 = vmatpush2.bf16.msra.mxu0 0
      %372 = vmatprep.subr.bf16.mxu0 0
      %373 = vmatpush2.bf16.msra.mxu0 0
      %374 = vmatprep.mubr.bf16.mxu0 0
      %375 = vmatmul.mubr.bf16.gmra.mxu0 %v276
      %v376 = vpop.f32.mrf.mxu0
      %v377 = vadd.f32 0.0, %v376
      %v378 = vpop.f32.mrf.mxu0
      %v379 = vpop.f32.mrf.mxu0
      %v380 = vpop.f32.mrf.mxu0
      %381 = vdwg.mxu0
      %v382 = vadd.f32 %v277, %v377
      %383 = vst [vmem:[#allocation2] sm:$0xff] %v382
      %p384 = scmp.eq.s32.totalorder %s19, 1
      // Predicated region
      $region49: #{hierarchical_malware_gnn_forward.5} parent=43 // pred_check
        %p385 = pneg %p384
      $region50: #{hierarchical_malware_gnn_forward.5} parent=43 // pred_check_branch
        %387 = sbr.rel (%p385) target = $region52
      $region51: #{hierarchical_malware_gnn_forward.5} parent=43 // pred_region
        %v388 = vld [vmem:[#allocation2] sm:$0xff]
        %v389 = vpack.c.bf16 %v388, %v388
        %v390 = vld [vmem:[%s2] sm:$0xff]
        %v391 = vld [vmem:[%s2 + $0x8] sm:$0xff]
        %v392 = vld [vmem:[%s2 + $0x10] sm:$0xff]
        %v393 = vld [vmem:[%s2 + $0x18] sm:$0xff]
        %v394 = vld [vmem:[%s2 + $0x20] sm:$0xff]
        %v395 = vld [vmem:[%s2 + $0x28] sm:$0xff]
        %v396 = vld [vmem:[%s2 + $0x30] sm:$0xff]
        %v397 = vld [vmem:[%s2 + $0x38] sm:$0xff]
        %v398 = vld [vmem:[%s2 + $0x40] sm:$0xff]
        %v399 = vld [vmem:[%s2 + $0x48] sm:$0xff]
        %v400 = vld [vmem:[%s2 + $0x50] sm:$0xff]
        %v401 = vld [vmem:[%s2 + $0x58] sm:$0xff]
        %v402 = vld [vmem:[%s2 + $0x60] sm:$0xff]
        %v403 = vld [vmem:[%s2 + $0x68] sm:$0xff]
        %v404 = vld [vmem:[%s2 + $0x70] sm:$0xff]
        %v405 = vld [vmem:[%s2 + $0x78] sm:$0xff]
        %v406 = vld [vmem:[%s3] sm:$0x3]
        %v408 = vlaneseq
        %v409 = vshrl.u32 %v408, 7
        %v410 = vsub.s32 0, %v409
        %v411 = vrot.slane %v406, %v410
        %v412 = vlaneseq
        %v413 = vshrl.u32 %v412, 7
        %v414 = vsub.s32 1, %v413
        %v415 = vrot.slane %v406, %v414
        %v434 = vunpack.c.l.b16 %v390
        %v435 = vunpack.c.h.b16 %v390
        %v436 = vunpack.c.l.b16 %v391
        %v437 = vunpack.c.h.b16 %v391
        %v438 = vunpack.c.l.b16 %v392
        %v439 = vunpack.c.h.b16 %v392
        %v440 = vunpack.c.l.b16 %v393
        %v441 = vunpack.c.h.b16 %v393
        %v442 = vunpack.c.l.b16 %v394
        %v443 = vunpack.c.h.b16 %v394
        %v444 = vunpack.c.l.b16 %v395
        %v445 = vunpack.c.h.b16 %v395
        %v446 = vunpack.c.l.b16 %v396
        %v447 = vunpack.c.h.b16 %v396
        %v448 = vunpack.c.l.b16 %v397
        %v449 = vunpack.c.h.b16 %v397
        %v450 = vunpack.c.l.b16 %v398
        %v451 = vunpack.c.h.b16 %v398
        %v452 = vunpack.c.l.b16 %v399
        %v453 = vunpack.c.h.b16 %v399
        %v454 = vunpack.c.l.b16 %v400
        %v455 = vunpack.c.h.b16 %v400
        %v456 = vunpack.c.l.b16 %v401
        %v457 = vunpack.c.h.b16 %v401
        %v458 = vunpack.c.l.b16 %v402
        %v459 = vunpack.c.h.b16 %v402
        %v460 = vunpack.c.l.b16 %v403
        %v461 = vunpack.c.h.b16 %v403
        %v462 = vunpack.c.l.b16 %v404
        %v463 = vunpack.c.h.b16 %v404
        %v464 = vunpack.c.l.b16 %v405
        %v465 = vunpack.c.h.b16 %v405
        %v466 = vpack.c.b16 %v436, %v434
        %v467 = vpack.c.b16 %v437, %v435
        %v468 = vpack.c.b16 %v440, %v438
        %v469 = vpack.c.b16 %v441, %v439
        %v470 = vpack.c.b16 %v444, %v442
        %v471 = vpack.c.b16 %v445, %v443
        %v472 = vpack.c.b16 %v448, %v446
        %v473 = vpack.c.b16 %v449, %v447
        %v474 = vpack.c.b16 %v452, %v450
        %v475 = vpack.c.b16 %v453, %v451
        %v476 = vpack.c.b16 %v456, %v454
        %v477 = vpack.c.b16 %v457, %v455
        %v478 = vpack.c.b16 %v460, %v458
        %v479 = vpack.c.b16 %v461, %v459
        %v480 = vpack.c.b16 %v464, %v462
        %v481 = vpack.c.b16 %v465, %v463
        %498 = vmatprep.subr.bf16.mxu0 %v481
        %499 = vmatpush1.bf16.msra.mxu0 %v480
        %500 = vmatprep.subr.bf16.mxu0 %v479
        %501 = vmatpush1.bf16.msra.mxu0 %v478
        %502 = vmatprep.subr.bf16.mxu0 %v477
        %503 = vmatpush1.bf16.msra.mxu0 %v476
        %504 = vmatprep.subr.bf16.mxu0 %v475
        %505 = vmatpush1.bf16.msra.mxu0 %v474
        %506 = vmatprep.subr.bf16.mxu0 %v473
        %507 = vmatpush1.bf16.msra.mxu0 %v472
        %508 = vmatprep.subr.bf16.mxu0 %v471
        %509 = vmatpush1.bf16.msra.mxu0 %v470
        %510 = vmatprep.subr.bf16.mxu0 %v469
        %511 = vmatpush1.bf16.msra.mxu0 %v468
        %512 = vmatprep.subr.bf16.mxu0 %v467
        %513 = vmatpush1.bf16.msra.mxu0 %v466
        %514 = vmatprep.subr.bf16.mxu0 0
        %515 = vmatpush2.bf16.msra.mxu0 0
        %516 = vmatprep.subr.bf16.mxu0 0
        %517 = vmatpush2.bf16.msra.mxu0 0
        %518 = vmatprep.subr.bf16.mxu0 0
        %519 = vmatpush2.bf16.msra.mxu0 0
        %520 = vmatprep.subr.bf16.mxu0 0
        %521 = vmatpush2.bf16.msra.mxu0 0
        %522 = vmatprep.subr.bf16.mxu0 0
        %523 = vmatpush2.bf16.msra.mxu0 0
        %524 = vmatprep.subr.bf16.mxu0 0
        %525 = vmatpush2.bf16.msra.mxu0 0
        %526 = vmatprep.subr.bf16.mxu0 0
        %527 = vmatpush2.bf16.msra.mxu0 0
        %528 = vmatprep.subr.bf16.mxu0 0
        %529 = vmatpush2.bf16.msra.mxu0 0
        %530 = vmatprep.mubr.bf16.mxu0 0
        %531 = vmatmul.mubr.bf16.gmra.mxu0 %v389
        %v532 = vpop.f32.mrf.mxu0
        %v533 = vadd.f32 %v411, %v532
        %v534 = vpop.f32.mrf.mxu0
        %v535 = vadd.f32 %v415, %v534
        %v536 = vpop.f32.mrf.mxu0
        %v537 = vpop.f32.mrf.mxu0
        %538 = vdwg.mxu0
        %539 = vst [vmem:[%s6] sm:$0xff] %v533
        %540 = vst [vmem:[%s6 + $0x8] sm:$0xff] %v535
        %v541 = vpack.c.bf16 %v533, %v533
        %v542 = vpack.c.bf16 %v535, %v535
        %v543 = vld [vmem:[%s4] sm:$0xf]
        %v544 = vld [vmem:[%s4 + $0x4] sm:$0xf]
        %v545 = vld [vmem:[%s4 + $0x8] sm:$0xf]
        %v546 = vld [vmem:[%s4 + $0xc] sm:$0xf]
        %v547 = vld [vmem:[%s4 + $0x10] sm:$0xf]
        %v548 = vld [vmem:[%s4 + $0x14] sm:$0xf]
        %v549 = vld [vmem:[%s4 + $0x18] sm:$0xf]
        %v550 = vld [vmem:[%s4 + $0x1c] sm:$0xf]
        %v551 = vld [vmem:[%s4 + $0x20] sm:$0xf]
        %v552 = vld [vmem:[%s4 + $0x24] sm:$0xf]
        %v553 = vld [vmem:[%s4 + $0x28] sm:$0xf]
        %v554 = vld [vmem:[%s4 + $0x2c] sm:$0xf]
        %v555 = vld [vmem:[%s4 + $0x30] sm:$0xf]
        %v556 = vld [vmem:[%s4 + $0x34] sm:$0xf]
        %v557 = vld [vmem:[%s4 + $0x38] sm:$0xf]
        %v558 = vld [vmem:[%s4 + $0x3c] sm:$0xf]
        %v559 = vld [vmem:[%s4 + $0x40] sm:$0xf]
        %v560 = vld [vmem:[%s4 + $0x44] sm:$0xf]
        %v561 = vld [vmem:[%s4 + $0x48] sm:$0xf]
        %v562 = vld [vmem:[%s4 + $0x4c] sm:$0xf]
        %v563 = vld [vmem:[%s4 + $0x50] sm:$0xf]
        %v564 = vld [vmem:[%s4 + $0x54] sm:$0xf]
        %v565 = vld [vmem:[%s4 + $0x58] sm:$0xf]
        %v566 = vld [vmem:[%s4 + $0x5c] sm:$0xf]
        %v567 = vld [vmem:[%s4 + $0x60] sm:$0xf]
        %v568 = vld [vmem:[%s4 + $0x64] sm:$0xf]
        %v569 = vld [vmem:[%s4 + $0x68] sm:$0xf]
        %v570 = vld [vmem:[%s4 + $0x6c] sm:$0xf]
        %v571 = vld [vmem:[%s4 + $0x70] sm:$0xf]
        %v572 = vld [vmem:[%s4 + $0x74] sm:$0xf]
        %v573 = vld [vmem:[%s4 + $0x78] sm:$0xf]
        %v574 = vld [vmem:[%s4 + $0x7c] sm:$0xf]
        %v575 = vld [vmem:[%s5] sm:$0x1]
        %v577 = vlaneseq
        %v578 = vshrl.u32 %v577, 7
        %v579 = vsub.s32 0, %v578
        %v580 = vrot.slane %v575, %v579
        %v614 = vunpack.c.l.b16 %v543
        %v615 = vunpack.c.l.b16 %v544
        %v616 = vunpack.c.l.b16 %v545
        %v617 = vunpack.c.l.b16 %v546
        %v618 = vunpack.c.l.b16 %v547
        %v619 = vunpack.c.l.b16 %v548
        %v620 = vunpack.c.l.b16 %v549
        %v621 = vunpack.c.l.b16 %v550
        %v622 = vunpack.c.l.b16 %v551
        %v623 = vunpack.c.l.b16 %v552
        %v624 = vunpack.c.l.b16 %v553
        %v625 = vunpack.c.l.b16 %v554
        %v626 = vunpack.c.l.b16 %v555
        %v627 = vunpack.c.l.b16 %v556
        %v628 = vunpack.c.l.b16 %v557
        %v629 = vunpack.c.l.b16 %v558
        %v630 = vunpack.c.l.b16 %v559
        %v631 = vunpack.c.l.b16 %v560
        %v632 = vunpack.c.l.b16 %v561
        %v633 = vunpack.c.l.b16 %v562
        %v634 = vunpack.c.l.b16 %v563
        %v635 = vunpack.c.l.b16 %v564
        %v636 = vunpack.c.l.b16 %v565
        %v637 = vunpack.c.l.b16 %v566
        %v638 = vunpack.c.l.b16 %v567
        %v639 = vunpack.c.l.b16 %v568
        %v640 = vunpack.c.l.b16 %v569
        %v641 = vunpack.c.l.b16 %v570
        %v642 = vunpack.c.l.b16 %v571
        %v643 = vunpack.c.l.b16 %v572
        %v644 = vunpack.c.l.b16 %v573
        %v645 = vunpack.c.l.b16 %v574
        %v646 = vpack.c.b16 %v615, %v614
        %v647 = vpack.c.b16 %v617, %v616
        %v648 = vpack.c.b16 %v619, %v618
        %v649 = vpack.c.b16 %v621, %v620
        %v650 = vpack.c.b16 %v623, %v622
        %v651 = vpack.c.b16 %v625, %v624
        %v652 = vpack.c.b16 %v627, %v626
        %v653 = vpack.c.b16 %v629, %v628
        %v654 = vpack.c.b16 %v631, %v630
        %v655 = vpack.c.b16 %v633, %v632
        %v656 = vpack.c.b16 %v635, %v634
        %v657 = vpack.c.b16 %v637, %v636
        %v658 = vpack.c.b16 %v639, %v638
        %v659 = vpack.c.b16 %v641, %v640
        %v660 = vpack.c.b16 %v643, %v642
        %v661 = vpack.c.b16 %v645, %v644
        %678 = vmatprep.subr.bf16.mxu0 0
        %679 = vmatpush1.bf16.msra.mxu0 %v653
        %680 = vmatprep.subr.bf16.mxu0 0
        %681 = vmatpush1.bf16.msra.mxu0 %v652
        %682 = vmatprep.subr.bf16.mxu0 0
        %683 = vmatpush1.bf16.msra.mxu0 %v651
        %684 = vmatprep.subr.bf16.mxu0 0
        %685 = vmatpush1.bf16.msra.mxu0 %v650
        %686 = vmatprep.subr.bf16.mxu0 0
        %687 = vmatpush1.bf16.msra.mxu0 %v649
        %688 = vmatprep.subr.bf16.mxu0 0
        %689 = vmatpush1.bf16.msra.mxu0 %v648
        %690 = vmatprep.subr.bf16.mxu0 0
        %691 = vmatpush1.bf16.msra.mxu0 %v647
        %692 = vmatprep.subr.bf16.mxu0 0
        %693 = vmatpush1.bf16.msra.mxu0 %v646
        %694 = vmatprep.subr.bf16.mxu0 0
        %695 = vmatpush2.bf16.msra.mxu0 %v661
        %696 = vmatprep.subr.bf16.mxu0 0
        %697 = vmatpush2.bf16.msra.mxu0 %v660
        %698 = vmatprep.subr.bf16.mxu0 0
        %699 = vmatpush2.bf16.msra.mxu0 %v659
        %700 = vmatprep.subr.bf16.mxu0 0
        %701 = vmatpush2.bf16.msra.mxu0 %v658
        %702 = vmatprep.subr.bf16.mxu0 0
        %703 = vmatpush2.bf16.msra.mxu0 %v657
        %704 = vmatprep.subr.bf16.mxu0 0
        %705 = vmatpush2.bf16.msra.mxu0 %v656
        %706 = vmatprep.subr.bf16.mxu0 0
        %707 = vmatpush2.bf16.msra.mxu0 %v655
        %708 = vmatprep.subr.bf16.mxu0 0
        %709 = vmatpush2.bf16.msra.mxu0 %v654
        %710 = vmatprep.mubr.bf16.mxu0 %v542
        %711 = vmatmul.mubr.bf16.gmra.mxu0 %v541
        %v712 = vpop.f32.mrf.mxu0
        %v713 = vadd.f32 %v580, %v712
        %v714 = vpop.f32.mrf.mxu0
        %v715 = vpop.f32.mrf.mxu0
        %v716 = vpop.f32.mrf.mxu0
        %717 = vdwg.mxu0
        %718 = vst [vmem:[%s7] sm:$0xff] %v713
      $region52: #{hierarchical_malware_gnn_forward.5} parent=43 // pred_fallthru
        _
      // Predicated region
      $region53: #{hierarchical_malware_gnn_forward.5} parent=43 // pred_check
        %p719 = pneg %p163
      $region54: #{hierarchical_malware_gnn_forward.5} parent=43 // pred_check_branch
        %721 = sbr.rel (%p719) target = $region56
      $region55: #{hierarchical_malware_gnn_forward.5} parent=43 // pred_region
        _
      $region56: #{hierarchical_malware_gnn_forward.5} parent=43 // pred_fallthru
        _
      // Predicated region
      $region57: #{hierarchical_malware_gnn_forward.5} parent=43 // pred_check
        %p722 = pneg %p184
      $region58: #{hierarchical_malware_gnn_forward.5} parent=43 // pred_check_branch
        %724 = sbr.rel (%p722) target = $region60
      $region59: #{hierarchical_malware_gnn_forward.5} parent=43 // pred_region
        _
      $region60: #{hierarchical_malware_gnn_forward.5} parent=43 // pred_fallthru
        _
      // Predicated region
      $region61: #{hierarchical_malware_gnn_forward.5} parent=43 // pred_check
        %p725 = pneg %p163
      $region62: #{hierarchical_malware_gnn_forward.5} parent=43 // pred_check_branch
        %727 = sbr.rel (%p725) target = $region64
      $region63: #{hierarchical_malware_gnn_forward.5} parent=43 // pred_region
        _
      $region64: #{hierarchical_malware_gnn_forward.5} parent=43 // pred_fallthru
        _
      // Predicated region
      $region65: #{hierarchical_malware_gnn_forward.5} parent=43 // pred_check
        %p728 = pneg %p184
      $region66: #{hierarchical_malware_gnn_forward.5} parent=43 // pred_check_branch
        %730 = sbr.rel (%p728) target = $region68
      $region67: #{hierarchical_malware_gnn_forward.5} parent=43 // pred_region
        _
      $region68: #{hierarchical_malware_gnn_forward.5} parent=43 // pred_fallthru
        _
    $region44: #{hierarchical_malware_gnn_forward.5} parent=5 // pred_fallthru
      _
    %p731 = scmp.le.s32.totalorder 2, %s14
    // Predicated region
    $region69: #{hierarchical_malware_gnn_forward.5} parent=5 // pred_check
      %p732 = pneg %p731
    $region70: #{hierarchical_malware_gnn_forward.5} parent=5 // pred_check_branch
      %734 = sbr.rel (%p732) target = $region72
    $region71: #{hierarchical_malware_gnn_forward.5} parent=5 // pred_region
      %s735 = ssub.s32 %s14, 2
    $region72: #{hierarchical_malware_gnn_forward.5} parent=5 // pred_fallthru
      _
  $region6: #{hierarchical_malware_gnn_forward.5} parent=0 // loop_footer
    %s18 = sadd.s32 1, %s14
  $region7: #{hierarchical_malware_gnn_forward.5} parent=0 // loop_footer_branch
    %13 = sbr.rel target = $region3
  $region8: #{hierarchical_malware_gnn_forward.5} parent=0 // loop_exit
    _

</llo_original>
